<compile_context>
chip_gen: v6e
topology: v6e:2x2x1
jax: 0.10.0
libtpu: 0.0.40
codegen_flags: <defaults>
</compile_context>

<pallas_src>
import jax
import jax.numpy as jnp
from jax.experimental import pallas as pl
from jax.experimental.pallas import tpu as pltpu


def _round_up(v, m):
    return -(-v // m) * m


# ----------------------------------------------------------------------------
# Kernel
# ----------------------------------------------------------------------------
def _make_encoder_kernel(n_hidden, latent_dim, num_classes, has_aux):
    """Fused MLP + output Linear + grouped-softmax kernel.

    Ref order: x, [aux], group_ones, w1_x, [w1_aux], b1, (w_i, b_i)*, w_out, b_out,
               logits_out, p_out
    """
    out_dim = latent_dim * num_classes

    def kernel(*refs):
        refs = list(refs)
        p_ref = refs.pop()
        logits_ref = refs.pop()
        x_ref = refs.pop(0)
        aux_ref = refs.pop(0) if has_aux else None
        ones_ref = refs.pop(0)
        w1x_ref = refs.pop(0)
        w1a_ref = refs.pop(0) if has_aux else None
        b1_ref = refs.pop(0)
        cdt = w1x_ref.dtype  # compute dtype (bf16)

        # First layer: cast f32 activations to bf16 *inside* the kernel.
        h = jnp.dot(x_ref[...].astype(cdt), w1x_ref[...],
                    preferred_element_type=jnp.float32)
        if has_aux:
            h = h + jnp.dot(aux_ref[...].astype(cdt), w1a_ref[...],
                            preferred_element_type=jnp.float32)
        h = jnp.maximum(h + b1_ref[...], 0.0)          # bias + ReLU in f32

        for _ in range(n_hidden - 1):
            w_ref = refs.pop(0)
            b_ref = refs.pop(0)
            h = jnp.dot(h.astype(cdt), w_ref[...],
                        preferred_element_type=jnp.float32) + b_ref[...]
            h = jnp.maximum(h, 0.0)

        wo_ref = refs.pop(0)
        bo_ref = refs.pop(0)
        logits = jnp.dot(h.astype(cdt), wo_ref[...],
                         preferred_element_type=jnp.float32) + bo_ref[...]
        logits_ref[...] = logits.astype(logits_ref.dtype)

        # ---- fused grouped-softmax epilogue (lane-dense slab) ----------------
        tb = logits.shape[0]
        z3 = logits.reshape(tb, latent_dim, num_classes)
        m = jnp.max(z3, axis=-1, keepdims=True)                  # per-group max
        m_full = jnp.broadcast_to(m, z3.shape).reshape(tb, out_dim)
        e = jnp.exp(logits - m_full)                             # one exp over slab
        # per-group sums broadcast to every lane of the group via a single bf16
        # matmul with a block-diagonal ones matrix (MXU is idle here).
        s = jnp.dot(e.astype(ones_ref.dtype), ones_ref[...],
                    preferred_element_type=jnp.float32)
        p_ref[...] = (e * pl.reciprocal(s, approx=True)).astype(p_ref.dtype)

    return kernel


# ----------------------------------------------------------------------------
# One-time parameter preparation (hoisted out of the per-step hot path)
# ----------------------------------------------------------------------------
def prepare_params(params, input_size, latent_dim, num_classes,
                   compute_dtype=jnp.bfloat16):
    """Cast weights to the MXU compute dtype, split the first weight at the
    x/aux boundary, reshape biases, and build the block-diagonal ones matrix.
    Call once per model and reuse the result for every forward call."""
    n_layers = len(params) // 2
    weights = [jnp.asarray(params[2 * i]) for i in range(n_layers)]
    biases = [jnp.asarray(params[2 * i + 1]) for i in range(n_layers)]
    out_dim = latent_dim * num_classes
    assert weights[-1].shape[-1] == out_dim
    w0 = weights[0]
    aux_size = int(w0.shape[0]) - int(input_size)
    assert aux_size >= 0

    ids = jnp.arange(out_dim) // num_classes
    group_ones = (ids[:, None] == ids[None, :]).astype(compute_dtype)

    return dict(
        w_first_x=w0[:input_size].astype(compute_dtype),
        w_first_aux=(w0[input_size:].astype(compute_dtype) if aux_size > 0 else None),
        w_rest=[w.astype(compute_dtype) for w in weights[1:]],
        biases=[b.astype(jnp.float32).reshape(1, -1) for b in biases],
        group_ones=group_ones,
        dims=[int(w0.shape[0])] + [int(w.shape[1]) for w in weights],
        input_size=int(input_size),
        aux_size=aux_size,
        latent_dim=int(latent_dim),
        num_classes=int(num_classes),
        compute_dtype=compute_dtype,
    )


# ----------------------------------------------------------------------------
# Forward wrapper
# ----------------------------------------------------------------------------
def dense_encoder_categorical(x, prepared, aux=None, *, tile_b=512,
                              logits_dtype=jnp.float32, p_dtype=jnp.float32,
                              vmem_limit_bytes=None):
    """Forward pass. x: [B, ...] float32 (flattened to [B, input_size]).
    Returns (logits [B, latent_dim, C], p_z [B, latent_dim, C])."""
    latent_dim = prepared["latent_dim"]
    num_classes = prepared["num_classes"]
    out_dim = latent_dim * num_classes
    compute_dtype = prepared["compute_dtype"]

    B = x.shape[0]
    x_flat = x.reshape(B, -1)                 # metadata-only reshape; stays f32
    in_x = x_flat.shape[1]
    assert in_x == prepared["input_size"]
    has_aux = aux is not None
    assert has_aux == (prepared["w_first_aux"] is not None)
    aux_dim = aux.shape[1] if has_aux else 0
    if has_aux:
        assert aux_dim == prepared["aux_size"]

    # ---- batch tiling: no padding; ragged last block handled by Pallas ------
    if B < 16:
        tb = B                                    # single block == full batch dim
    elif B <= tile_b:
        # split into >= 2 grid steps so the "parallel" axis feeds both v7x TCs
        tb = _round_up(pl.cdiv(B, 2), 8)
    else:
        tb = max(8, (tile_b // 8) * 8)            # (8,128) sublane rule
    grid_b = pl.cdiv(B, tb)

    batch_map = lambda i: (i, 0)
    const_map = lambda i: (0, 0)
    resident = dict(pipeline_mode=pl.Buffered(1))  # constant blocks: 1 VMEM buffer

    w_rest = prepared["w_rest"]
    b_all = prepared["biases"]
    n_hidden = len(w_rest)                         # hidden layers (excl. output)
    assert n_hidden >= 1

    operands = [x_flat]
    in_specs = [pl.BlockSpec((tb, in_x), batch_map)]
    if has_aux:
        operands.append(aux)
        in_specs.append(pl.BlockSpec((tb, aux_dim), batch_map))
    operands.append(prepared["group_ones"])
    in_specs.append(pl.BlockSpec((out_dim, out_dim), const_map, **resident))
    operands.append(prepared["w_first_x"])
    in_specs.append(pl.BlockSpec(prepared["w_first_x"].shape, const_map, **resident))
    if has_aux:
        operands.append(prepared["w_first_aux"])
        in_specs.append(pl.BlockSpec(prepared["w_first_aux"].shape, const_map, **resident))
    operands.append(b_all[0])
    in_specs.append(pl.BlockSpec(b_all[0].shape, const_map, **resident))
    for w, b in zip(w_rest, b_all[1:]):
        operands += [w, b]
        in_specs += [pl.BlockSpec(w.shape, const_map, **resident),
                     pl.BlockSpec(b.shape, const_map, **resident)]

    # ---- VMEM budget (v5e default scoped limit is only 16 MiB) --------------
    if vmem_limit_bytes is None:
        c_item = jnp.dtype(compute_dtype).itemsize
        est = 2 * tb * in_x * x_flat.dtype.itemsize              # x, double-buffered
        if has_aux:
            est += 2 * tb * aux_dim * aux.dtype.itemsize
        est += sum(int(prepared["w_first_x"].size) * c_item
                   for _ in (0,))                                 # first weight (x part)
        if has_aux:
            est += int(prepared["w_first_aux"].size) * c_item
        est += sum(int(w.size) * c_item for w in w_rest)
        est += int(prepared["group_ones"].size) * c_item
        est += sum(int(b.size) * 4 for b in b_all)
        est += 2 * tb * out_dim * (jnp.dtype(logits_dtype).itemsize
                                   + jnp.dtype(p_dtype).itemsize)  # outputs, dbl-buf
        est += 4 * tb * max(prepared["dims"]) * 4                  # activation headroom
        vmem_limit_bytes = int(min(max(est * 5 // 4, 32 * 2 ** 20), 64 * 2 ** 20))

    # ---- advisory cost estimate ---------------------------------------------
    dims = prepared["dims"]
    rows = grid_b * tb
    flops = 2 * rows * (sum(dims[i] * dims[i + 1] for i in range(len(dims) - 1))
                        + out_dim * out_dim)
    bytes_accessed = int(sum(int(o.size) * o.dtype.itemsize for o in operands)
                         + rows * out_dim * (jnp.dtype(logits_dtype).itemsize
                                             + jnp.dtype(p_dtype).itemsize))
    cost = pl.CostEstimate(flops=int(flops),
                           transcendentals=int(rows * out_dim),
                           bytes_accessed=bytes_accessed)

    kernel = _make_encoder_kernel(n_hidden, latent_dim, num_classes, has_aux)

    logits_flat, p_flat = pl.pallas_call(
        kernel,
        grid=(grid_b,),
        out_shape=(jax.ShapeDtypeStruct((B, out_dim), logits_dtype),
                   jax.ShapeDtypeStruct((B, out_dim), p_dtype)),
        in_specs=in_specs,
        out_specs=(pl.BlockSpec((tb, out_dim), batch_map),
                   pl.BlockSpec((tb, out_dim), batch_map)),
        compiler_params=pltpu.CompilerParams(
            dimension_semantics=("parallel",),
            vmem_limit_bytes=vmem_limit_bytes),
        cost_estimate=cost,
    )(*operands)

    logits = logits_flat.reshape(B, latent_dim, num_classes)
    p_z = p_flat.reshape(B, latent_dim, num_classes)
    return logits, p_z


# ----------------------------------------------------------------------------
# Parameter init (torch nn.Linear-style uniform) and pure-JAX reference
# ----------------------------------------------------------------------------
def init_params(key, input_size, layers, latent_dim, num_classes):
    dims = [input_size] + list(layers) + [latent_dim * num_classes]
    keys = jax.random.split(key, 2 * (len(dims) - 1))
    params = []
    for i in range(len(dims) - 1):
        fan_in, fan_out = dims[i], dims[i + 1]
        scale = 1.0 / float(fan_in) ** 0.5
        w = jax.random.uniform(keys[2 * i], (fan_in, fan_out), jnp.float32, -scale, scale)
        b = jax.random.uniform(keys[2 * i + 1], (fan_out,), jnp.float32, -scale, scale)
        params += [w, b]
    return tuple(params)


def _ref_forward(x, params, latent_dim, num_classes, aux=None,
                 compute_dtype=jnp.bfloat16):
    B = x.shape[0]
    h = x.reshape(B, -1)
    if aux is not None:
        h = jnp.concatenate([h, aux], axis=-1)
    h = h.astype(compute_dtype)
    n_hidden = len(params) // 2 - 1
    for i in range(n_hidden):
        w, b = params[2 * i], params[2 * i + 1]
        h = jnp.dot(h, w.astype(compute_dtype),
                    preferred_element_type=jnp.float32) + b.reshape(1, -1)
        h = jnp.maximum(h, 0.0).astype(compute_dtype)
    wo, bo = params[-2], params[-1]
    logits = jnp.dot(h, wo.astype(compute_dtype),
                     preferred_element_type=jnp.float32) + bo.reshape(1, -1)
    logits = logits.reshape(B, latent_dim, num_classes)
    return logits, jax.nn.softmax(logits, axis=-1)


if __name__ == "__main__":
    # Shapes consistent with the module; hidden dims 128-aligned (MXU-friendly),
    # out_dim = latent_dim*num_classes = 128 (lane-dense output).
    B, C, H, W = 2, 4, 16, 16            # input_size = 1024
    layers = (256, 256)
    latent_dim, num_classes = 8, 16      # output_size = 128

    key = jax.random.PRNGKey(0)
    k_x, k_p, k_x2, k_aux, k_p2 = jax.random.split(key, 5)

    # --- case 1: small batch, no aux (single block) --------------------------
    x = jax.random.normal(k_x, (B, C, H, W), dtype=jnp.float32)
    params = init_params(k_p, C * H * W, layers, latent_dim, num_classes)
    prep = prepare_params(params, C * H * W, latent_dim, num_classes)
    logits, p_z = dense_encoder_categorical(x, prep)
    jax.block_until_ready((logits, p_z))

    ref_logits, ref_p = _ref_forward(x, params, latent_dim, num_classes)
    assert logits.shape == (B, latent_dim, num_classes)
    assert p_z.shape == (B, latent_dim, num_classes)
    assert jnp.allclose(logits, ref_logits, atol=1e-3, rtol=1e-3)
    assert jnp.allclose(p_z, ref_p, atol=1e-2, rtol=1e-2)
    assert jnp.allclose(jnp.sum(p_z, axis=-1), 1.0, atol=1e-2)

    # --- case 2: larger batch with aux (multi-step grid + ragged last block) -
    B2, aux_size = 200, 64
    x2 = jax.random.normal(k_x2, (B2, C, H, W), dtype=jnp.float32)
    aux = jax.random.normal(k_aux, (B2, aux_size), dtype=jnp.float32)
    params2 = init_params(k_p2, C * H * W + aux_size, layers, latent_dim, num_classes)
    prep2 = prepare_params(params2, C * H * W, latent_dim, num_classes)
    logits2, p_z2 = dense_encoder_categorical(x2, prep2, aux=aux)
    jax.block_until_ready((logits2, p_z2))

    ref_logits2, ref_p2 = _ref_forward(x2, params2, latent_dim, num_classes, aux=aux)
    assert logits2.shape == (B2, latent_dim, num_classes)
    assert p_z2.shape == (B2, latent_dim, num_classes)
    assert jnp.allclose(logits2, ref_logits2, atol=1e-3, rtol=1e-3)
    assert jnp.allclose(p_z2, ref_p2, atol=1e-2, rtol=1e-2)
    assert jnp.allclose(jnp.sum(p_z2, axis=-1), 1.0, atol=1e-2)

    print("KERNEL_OK")
</pallas_src>

<mosaic_0001>
module attributes {stable_mosaic.version = 11 : i64} {
  func.func @kernel(%arg0: i32, %arg1: memref<2x1024xf32, #tpu.memory_space<vmem>>, %arg2: memref<128x128xbf16, #tpu.memory_space<vmem>>, %arg3: memref<1024x256xbf16, #tpu.memory_space<vmem>>, %arg4: memref<1x256xf32, #tpu.memory_space<vmem>>, %arg5: memref<256x256xbf16, #tpu.memory_space<vmem>>, %arg6: memref<1x256xf32, #tpu.memory_space<vmem>>, %arg7: memref<256x128xbf16, #tpu.memory_space<vmem>>, %arg8: memref<1x128xf32, #tpu.memory_space<vmem>>, %arg9: memref<2x128xf32, #tpu.memory_space<vmem>>, %arg10: memref<2x128xf32, #tpu.memory_space<vmem>>) attributes {dimension_semantics = [#tpu.dimension_semantics<parallel>], iteration_bounds = array<i64: 1>, scalar_prefetch = 0 : i64, scratch_operands = 0 : i64, tpu.core_type = #tpu.core_type<tc>, window_params = [{transform_indices = @transform_0, window_bounds = array<i64: 2, 1024>}, {pipeline_mode = #tpu.pipeline_mode<synchronous>, transform_indices = @transform_1, window_bounds = array<i64: 128, 128>}, {pipeline_mode = #tpu.pipeline_mode<synchronous>, transform_indices = @transform_2, window_bounds = array<i64: 1024, 256>}, {pipeline_mode = #tpu.pipeline_mode<synchronous>, transform_indices = @transform_3, window_bounds = array<i64: 1, 256>}, {pipeline_mode = #tpu.pipeline_mode<synchronous>, transform_indices = @transform_4, window_bounds = array<i64: 256, 256>}, {pipeline_mode = #tpu.pipeline_mode<synchronous>, transform_indices = @transform_5, window_bounds = array<i64: 1, 256>}, {pipeline_mode = #tpu.pipeline_mode<synchronous>, transform_indices = @transform_6, window_bounds = array<i64: 256, 128>}, {pipeline_mode = #tpu.pipeline_mode<synchronous>, transform_indices = @transform_7, window_bounds = array<i64: 1, 128>}, {transform_indices = @transform_8, window_bounds = array<i64: 2, 128>}, {transform_indices = @transform_9, window_bounds = array<i64: 2, 128>}]} {
    %c0 = arith.constant 0 : index
    %c0_0 = arith.constant 0 : index
    %0 = vector.load %arg1[%c0, %c0_0] : memref<2x1024xf32, #tpu.memory_space<vmem>>, vector<2x1024xf32>
    %1 = arith.truncf %0 : vector<2x1024xf32> to vector<2x1024xbf16>
    %c0_1 = arith.constant 0 : index
    %c0_2 = arith.constant 0 : index
    %2 = vector.load %arg3[%c0_1, %c0_2] : memref<1024x256xbf16, #tpu.memory_space<vmem>>, vector<1024x256xbf16>
    %cst = arith.constant dense<0.000000e+00> : vector<2x256xf32>
    %3 = tpu.matmul %1, %2, %cst {dimension_numbers = #tpu.dot_dimension_numbers<[1], [0], [0], [1], [0, 0, 1, 1], [], []>} : vector<2x1024xbf16>, vector<1024x256xbf16>, vector<2x256xf32> -> vector<2x256xf32>
    %c0_3 = arith.constant 0 : index
    %c0_4 = arith.constant 0 : index
    %4 = vector.load %arg4[%c0_3, %c0_4] : memref<1x256xf32, #tpu.memory_space<vmem>>, vector<1x256xf32>
    %5 = vector.broadcast %4 : vector<1x256xf32> to vector<2x256xf32>
    %6 = arith.addf %3, %5 : vector<2x256xf32>
    %cst_5 = arith.constant 0.000000e+00 : f32
    %7 = vector.broadcast %cst_5 : f32 to vector<2x256xf32>
    %8 = arith.maximumf %6, %7 : vector<2x256xf32>
    %9 = arith.truncf %8 : vector<2x256xf32> to vector<2x256xbf16>
    %c0_6 = arith.constant 0 : index
    %c0_7 = arith.constant 0 : index
    %10 = vector.load %arg5[%c0_6, %c0_7] : memref<256x256xbf16, #tpu.memory_space<vmem>>, vector<256x256xbf16>
    %cst_8 = arith.constant dense<0.000000e+00> : vector<2x256xf32>
    %11 = tpu.matmul %9, %10, %cst_8 {dimension_numbers = #tpu.dot_dimension_numbers<[1], [0], [0], [1], [0, 0, 1, 1], [], []>} : vector<2x256xbf16>, vector<256x256xbf16>, vector<2x256xf32> -> vector<2x256xf32>
    %c0_9 = arith.constant 0 : index
    %c0_10 = arith.constant 0 : index
    %12 = vector.load %arg6[%c0_9, %c0_10] : memref<1x256xf32, #tpu.memory_space<vmem>>, vector<1x256xf32>
    %13 = vector.broadcast %12 : vector<1x256xf32> to vector<2x256xf32>
    %14 = arith.addf %11, %13 : vector<2x256xf32>
    %cst_11 = arith.constant 0.000000e+00 : f32
    %15 = vector.broadcast %cst_11 : f32 to vector<2x256xf32>
    %16 = arith.maximumf %14, %15 : vector<2x256xf32>
    %17 = arith.truncf %16 : vector<2x256xf32> to vector<2x256xbf16>
    %c0_12 = arith.constant 0 : index
    %c0_13 = arith.constant 0 : index
    %18 = vector.load %arg7[%c0_12, %c0_13] : memref<256x128xbf16, #tpu.memory_space<vmem>>, vector<256x128xbf16>
    %cst_14 = arith.constant dense<0.000000e+00> : vector<2x128xf32>
    %19 = tpu.matmul %17, %18, %cst_14 {dimension_numbers = #tpu.dot_dimension_numbers<[1], [0], [0], [1], [0, 0, 1, 1], [], []>} : vector<2x256xbf16>, vector<256x128xbf16>, vector<2x128xf32> -> vector<2x128xf32>
    %c0_15 = arith.constant 0 : index
    %c0_16 = arith.constant 0 : index
    %20 = vector.load %arg8[%c0_15, %c0_16] : memref<1x128xf32, #tpu.memory_space<vmem>>, vector<1x128xf32>
    %21 = vector.broadcast %20 : vector<1x128xf32> to vector<2x128xf32>
    %22 = arith.addf %19, %21 : vector<2x128xf32>
    %c0_17 = arith.constant 0 : index
    %c0_18 = arith.constant 0 : index
    %23 = vector.load %arg9[%c0_17, %c0_18] : memref<2x128xf32, #tpu.memory_space<vmem>>, vector<2x128xf32>
    tpu.vector_store %arg9[%c0_17, %c0_18], %22 {strides = array<i32>} : memref<2x128xf32, #tpu.memory_space<vmem>>, vector<2x128xf32>,
    %24 = vector.shape_cast %22 : vector<2x128xf32> to vector<2x8x16xf32>
    %cst_19 = arith.constant dense<0xFF800000> : vector<2x8xf32>
    %25 = vector.multi_reduction <maximumf>, %24, %cst_19 [2] : vector<2x8x16xf32> to vector<2x8xf32>
    %26 = vector.shape_cast %25 : vector<2x8xf32> to vector<2x8x1xf32>
    %27 = vector.shape_cast %26 : vector<2x8x1xf32> to vector<2x8x1xf32>
    %28 = vector.broadcast %27 : vector<2x8x1xf32> to vector<2x8x16xf32>
    %29 = vector.shape_cast %28 : vector<2x8x16xf32> to vector<2x128xf32>
    %30 = arith.subf %22, %29 : vector<2x128xf32>
    %31 = math.exp %30 : vector<2x128xf32>
    %32 = arith.truncf %31 : vector<2x128xf32> to vector<2x128xbf16>
    %c0_20 = arith.constant 0 : index
    %c0_21 = arith.constant 0 : index
    %33 = vector.load %arg2[%c0_20, %c0_21] : memref<128x128xbf16, #tpu.memory_space<vmem>>, vector<128x128xbf16>
    %cst_22 = arith.constant dense<0.000000e+00> : vector<2x128xf32>
    %34 = tpu.matmul %32, %33, %cst_22 {dimension_numbers = #tpu.dot_dimension_numbers<[1], [0], [0], [1], [0, 0, 1, 1], [], []>} : vector<2x128xbf16>, vector<128x128xbf16>, vector<2x128xf32> -> vector<2x128xf32>
    %35 = tpu.reciprocal %34 {approx = true} : vector<2x128xf32> -> vector<2x128xf32>
    %36 = arith.mulf %31, %35 : vector<2x128xf32>
    %c0_23 = arith.constant 0 : index
    %c0_24 = arith.constant 0 : index
    %37 = vector.load %arg10[%c0_23, %c0_24] : memref<2x128xf32, #tpu.memory_space<vmem>>, vector<2x128xf32>
    tpu.vector_store %arg10[%c0_23, %c0_24], %36 {strides = array<i32>} : memref<2x128xf32, #tpu.memory_space<vmem>>, vector<2x128xf32>,
    return
  }
  func.func @transform_0(%arg0: i32) -> (i32, i32) {
    %c0_i32 = arith.constant 0 : i32
    %c0_i32_0 = arith.constant 0 : i32
    return %arg0, %c0_i32 : i32, i32
  }
  func.func @transform_1(%arg0: i32) -> (i32, i32) {
    %c0_i32 = arith.constant 0 : i32
    %c0_i32_0 = arith.constant 0 : i32
    %c0_i32_1 = arith.constant 0 : i32
    return %c0_i32, %c0_i32_0 : i32, i32
  }
  func.func @transform_2(%arg0: i32) -> (i32, i32) {
    %c0_i32 = arith.constant 0 : i32
    %c0_i32_0 = arith.constant 0 : i32
    %c0_i32_1 = arith.constant 0 : i32
    return %c0_i32, %c0_i32_0 : i32, i32
  }
  func.func @transform_3(%arg0: i32) -> (i32, i32) {
    %c0_i32 = arith.constant 0 : i32
    %c0_i32_0 = arith.constant 0 : i32
    %c0_i32_1 = arith.constant 0 : i32
    return %c0_i32, %c0_i32_0 : i32, i32
  }
  func.func @transform_4(%arg0: i32) -> (i32, i32) {
    %c0_i32 = arith.constant 0 : i32
    %c0_i32_0 = arith.constant 0 : i32
    %c0_i32_1 = arith.constant 0 : i32
    return %c0_i32, %c0_i32_0 : i32, i32
  }
  func.func @transform_5(%arg0: i32) -> (i32, i32) {
    %c0_i32 = arith.constant 0 : i32
    %c0_i32_0 = arith.constant 0 : i32
    %c0_i32_1 = arith.constant 0 : i32
    return %c0_i32, %c0_i32_0 : i32, i32
  }
  func.func @transform_6(%arg0: i32) -> (i32, i32) {
    %c0_i32 = arith.constant 0 : i32
    %c0_i32_0 = arith.constant 0 : i32
    %c0_i32_1 = arith.constant 0 : i32
    return %c0_i32, %c0_i32_0 : i32, i32
  }
  func.func @transform_7(%arg0: i32) -> (i32, i32) {
    %c0_i32 = arith.constant 0 : i32
    %c0_i32_0 = arith.constant 0 : i32
    %c0_i32_1 = arith.constant 0 : i32
    return %c0_i32, %c0_i32_0 : i32, i32
  }
  func.func @transform_8(%arg0: i32) -> (i32, i32) {
    %c0_i32 = arith.constant 0 : i32
    %c0_i32_0 = arith.constant 0 : i32
    return %arg0, %c0_i32 : i32, i32
  }
  func.func @transform_9(%arg0: i32) -> (i32, i32) {
    %c0_i32 = arith.constant 0 : i32
    %c0_i32_0 = arith.constant 0 : i32
    return %arg0, %c0_i32 : i32, i32
  }
}

</mosaic_0001>

<llo_original>
// kernel: tpu_custom_call.1
$region0: #{tpu_custom_call.1}
  #allocation0 [shape = 'u32[]', space=smem, size = 0x4, offset = 0x4, fixed_abs, tag = 'smem constant byte address 0x4 - core index']
  #allocation1 [shape = 'u32[144,128]{1,0:T(1,128)}', space=vmem, size = 0x12000, scoped, tag = 'internal scratch']
  %s0 = inlined_call_operand.hbm [shape: f32[2,1024], index: 0, kind: input, shape index: {}]
  %s1 = inlined_call_operand.hbm [shape: bf16[128,128], index: 1, kind: input, shape index: {}]
  %s2 = inlined_call_operand.hbm [shape: bf16[1024,256], index: 2, kind: input, shape index: {}]
  %s3 = inlined_call_operand.vmem [shape: f32[1,256], index: 3, kind: input, shape index: {}]
  %s4 = inlined_call_operand.hbm [shape: bf16[256,256], index: 4, kind: input, shape index: {}]
  %s5 = inlined_call_operand.vmem [shape: f32[1,256], index: 5, kind: input, shape index: {}]
  %s6 = inlined_call_operand.hbm [shape: bf16[256,128], index: 6, kind: input, shape index: {}]
  %s7 = inlined_call_operand.vmem [shape: f32[1,128], index: 7, kind: input, shape index: {}]
  %s8 = inlined_call_operand.hbm [shape: f32[2,128], index: 8, kind: output, shape index: {0}]
  %s9 = inlined_call_operand.hbm [shape: f32[2,128], index: 9, kind: output, shape index: {1}]
  %10 = xla_tuple %s8, %s9
  %s11 = sld [smem:[#allocation0]]
  $region70: #{tpu_custom_call.1} parent=0
    _
  %s13 = ssub.s32 1, %s11
  %s14 = scalar_select 0, %s13, %s11
  $region1: #{tpu_custom_call.1} parent=0
    #allocation2 [shape = 'u8[8192]{0}', space=vmem, size = 0x2000, scoped, tag = 'input window, operand 0, single buffered']
    #allocation3 [shape = 's32[1]{0}', space=sflag, size = 0x4, scoped, tag = 'scoped memory for tpu_custom_call.1']
    #allocation4 [shape = 's32[1]{0}', space=sflag, size = 0x4, scoped, tag = 'scoped memory for tpu_custom_call.1']
    #allocation5 [shape = 'u8[32768]{0}', space=vmem, size = 0x8000, scoped, tag = 'input window, operand 1, single buffered']
    #allocation6 [shape = 's32[1]{0}', space=sflag, size = 0x4, scoped, tag = 'scoped memory for tpu_custom_call.1']
    #allocation7 [shape = 'u8[524288]{0}', space=vmem, size = 0x80000, scoped, tag = 'input window, operand 2, single buffered']
    #allocation8 [shape = 'u8[131072]{0}', space=vmem, size = 0x20000, scoped, tag = 'input window, operand 4, single buffered']
    #allocation9 [shape = 's32[1]{0}', space=sflag, size = 0x4, scoped, tag = 'scoped memory for tpu_custom_call.1']
    #allocation10 [shape = 'u8[65536]{0}', space=vmem, size = 0x10000, scoped, tag = 'input window, operand 6, single buffered']
    #allocation11 [shape = 'u8[1024]{0}', space=vmem, size = 0x400, scoped, tag = 'output window, operand 0, single buffered']
    #allocation12 [shape = 'u8[1024]{0}', space=vmem, size = 0x400, scoped, tag = 'output window, operand 1, single buffered']
    #allocation13 [shape = 's32[1]{0}', space=sflag, size = 0x4, scoped, tag = 'scoped memory for tpu_custom_call.1']
    %15 = vsyncpa [#allocation3], 0
    %16 = vsyncpa [#allocation6], 0
    %17 = vsyncpa [#allocation9], 0
    %18 = vsyncpa [#allocation4], 0
    %19 = vsyncpa [#allocation13], 0
    // Predicated region
    $region2: #{tpu_custom_call.1} parent=1 // pred_check
      _
    $region3: #{tpu_custom_call.1} parent=1 // pred_check_branch
      %21 = sbr.rel (0) target = $region5
    $region4: #{tpu_custom_call.1} parent=1 // pred_region
      %s23 = ssub.s32 256, 256
      %24 = vsyncadd [#allocation3], %s23
      %s26 = sshll.u32 [#allocation2], 4
      %s27 = int_to_ptr.vmem [resolvable:$true] %s26
      %29 = dma.hbm_to_vmem [thread:$0]  %s0, 256, %s27, [#allocation3]
    $region5: #{tpu_custom_call.1} parent=1 // pred_fallthru
      _
    // Predicated region
    $region6: #{tpu_custom_call.1} parent=1 // pred_check
      _
    $region7: #{tpu_custom_call.1} parent=1 // pred_check_branch
      %31 = sbr.rel (0) target = $region9
    $region8: #{tpu_custom_call.1} parent=1 // pred_region
      %s33 = ssub.s32 1024, 1024
      %34 = vsyncadd [#allocation6], %s33
      %s35 = sshll.u32 [#allocation5], 4
      %s36 = int_to_ptr.vmem [resolvable:$true] %s35
      %41 = dma.hbm_to_vmem [thread:$0]  %s1, 1024, %s36, [#allocation6], 64, 64, 4
    $region9: #{tpu_custom_call.1} parent=1 // pred_fallthru
      _
    // Predicated region
    $region10: #{tpu_custom_call.1} parent=1 // pred_check
      _
    $region11: #{tpu_custom_call.1} parent=1 // pred_check_branch
      %43 = sbr.rel (0) target = $region13
    $region12: #{tpu_custom_call.1} parent=1 // pred_region
      %s45 = ssub.s32 16384, 16384
      %46 = vsyncadd [#allocation6], %s45
      %s47 = sshll.u32 [#allocation7], 4
      %s48 = int_to_ptr.vmem [resolvable:$true] %s47
      %53 = dma.hbm_to_vmem [thread:$0]  %s2, 16384, %s48, [#allocation6], 128, 128, 8
    $region13: #{tpu_custom_call.1} parent=1 // pred_fallthru
      _
    // Predicated region
    $region14: #{tpu_custom_call.1} parent=1 // pred_check
      _
    $region15: #{tpu_custom_call.1} parent=1 // pred_check_branch
      %55 = sbr.rel (0) target = $region17
    $region16: #{tpu_custom_call.1} parent=1 // pred_region
      _
    $region17: #{tpu_custom_call.1} parent=1 // pred_fallthru
      _
    // Predicated region
    $region18: #{tpu_custom_call.1} parent=1 // pred_check
      _
    $region19: #{tpu_custom_call.1} parent=1 // pred_check_branch
      %57 = sbr.rel (0) target = $region21
    $region20: #{tpu_custom_call.1} parent=1 // pred_region
      %s59 = ssub.s32 4096, 4096
      %60 = vsyncadd [#allocation9], %s59
      %s61 = sshll.u32 [#allocation8], 4
      %s62 = int_to_ptr.vmem [resolvable:$true] %s61
      %67 = dma.hbm_to_vmem [thread:$0]  %s4, 4096, %s62, [#allocation9], 128, 128, 8
    $region21: #{tpu_custom_call.1} parent=1 // pred_fallthru
      _
    // Predicated region
    $region22: #{tpu_custom_call.1} parent=1 // pred_check
      _
    $region23: #{tpu_custom_call.1} parent=1 // pred_check_branch
      %69 = sbr.rel (0) target = $region25
    $region24: #{tpu_custom_call.1} parent=1 // pred_region
      _
    $region25: #{tpu_custom_call.1} parent=1 // pred_fallthru
      _
    // Predicated region
    $region26: #{tpu_custom_call.1} parent=1 // pred_check
      _
    $region27: #{tpu_custom_call.1} parent=1 // pred_check_branch
      %71 = sbr.rel (0) target = $region29
    $region28: #{tpu_custom_call.1} parent=1 // pred_region
      %s73 = ssub.s32 2048, 2048
      %74 = vsyncadd [#allocation9], %s73
      %s75 = sshll.u32 [#allocation10], 4
      %s76 = int_to_ptr.vmem [resolvable:$true] %s75
      %81 = dma.hbm_to_vmem [thread:$0]  %s6, 2048, %s76, [#allocation9], 64, 64, 4
    $region29: #{tpu_custom_call.1} parent=1 // pred_fallthru
      _
    // Predicated region
    $region30: #{tpu_custom_call.1} parent=1 // pred_check
      _
    $region31: #{tpu_custom_call.1} parent=1 // pred_check_branch
      %83 = sbr.rel (0) target = $region33
    $region32: #{tpu_custom_call.1} parent=1 // pred_region
      _
    $region33: #{tpu_custom_call.1} parent=1 // pred_fallthru
      _
    // Predicated region
    $region34: #{tpu_custom_call.1} parent=1 // pred_check
      _
    $region35: #{tpu_custom_call.1} parent=1 // pred_check_branch
      %85 = sbr.rel (0) target = $region37
    $region36: #{tpu_custom_call.1} parent=1 // pred_region
      %86 = dma.done [#allocation3], 256
    $region37: #{tpu_custom_call.1} parent=1 // pred_fallthru
      _
    // Predicated region
    $region38: #{tpu_custom_call.1} parent=1 // pred_check
      _
    $region39: #{tpu_custom_call.1} parent=1 // pred_check_branch
      %88 = sbr.rel (0) target = $region41
    $region40: #{tpu_custom_call.1} parent=1 // pred_region
      %89 = dma.done [#allocation6], 1024
    $region41: #{tpu_custom_call.1} parent=1 // pred_fallthru
      _
    // Predicated region
    $region42: #{tpu_custom_call.1} parent=1 // pred_check
      _
    $region43: #{tpu_custom_call.1} parent=1 // pred_check_branch
      %91 = sbr.rel (0) target = $region45
    $region44: #{tpu_custom_call.1} parent=1 // pred_region
      %92 = dma.done [#allocation6], 16384
    $region45: #{tpu_custom_call.1} parent=1 // pred_fallthru
      _
    // Predicated region
    $region46: #{tpu_custom_call.1} parent=1 // pred_check
      _
    $region47: #{tpu_custom_call.1} parent=1 // pred_check_branch
      %94 = sbr.rel (0) target = $region49
    $region48: #{tpu_custom_call.1} parent=1 // pred_region
      %95 = dma.done [#allocation9], 4096
    $region49: #{tpu_custom_call.1} parent=1 // pred_fallthru
      _
    // Predicated region
    $region50: #{tpu_custom_call.1} parent=1 // pred_check
      _
    $region51: #{tpu_custom_call.1} parent=1 // pred_check_branch
      %97 = sbr.rel (0) target = $region53
    $region52: #{tpu_custom_call.1} parent=1 // pred_region
      %98 = dma.done [#allocation9], 2048
    $region53: #{tpu_custom_call.1} parent=1 // pred_fallthru
      _
    %v100 = vld [vmem:[#allocation2] sm:$0xff]
    %v101 = vld [vmem:[#allocation2 + $0x8] sm:$0xff]
    %v104 = vcombine.high %v100, %v100
    %v106 = vunpack.c.l.s4 1983009808
    %v107 = vunpack.c.0.s8 %v106
    %v108 = vlaneseq
    %v109 = vshrl.u32 %v108, 7
    %v110 = vsub.s32 %v107, %v109
    %v111 = vrot.slane %v100, %v110
    %v113 = vunpack.c.l.s4 1983009808
    %v114 = vunpack.c.0.s8 %v113
    %v115 = vlaneseq
    %v116 = vshrl.u32 %v115, 7
    %v117 = vsub.s32 %v114, %v116
    %v118 = vrot.slane %v104, %v117
    %v119 = vcombine.high %v111, %v111
    %v120 = vcombine.high %v118, %v118
    %v121 = vcombine.high %v101, %v101
    %v123 = vunpack.c.l.s4 1983009808
    %v124 = vunpack.c.0.s8 %v123
    %v125 = vlaneseq
    %v126 = vshrl.u32 %v125, 7
    %v127 = vsub.s32 %v124, %v126
    %v128 = vrot.slane %v101, %v127
    %v130 = vunpack.c.l.s4 1983009808
    %v131 = vunpack.c.0.s8 %v130
    %v132 = vlaneseq
    %v133 = vshrl.u32 %v132, 7
    %v134 = vsub.s32 %v131, %v133
    %v135 = vrot.slane %v121, %v134
    %v136 = vcombine.high %v128, %v128
    %v137 = vcombine.high %v135, %v135
    %v146 = vpack.c.bf16 %v111, %v111
    %v147 = vpack.c.bf16 %v119, %v119
    %v148 = vpack.c.bf16 %v118, %v118
    %v149 = vpack.c.bf16 %v120, %v120
    %v150 = vpack.c.bf16 %v128, %v128
    %v151 = vpack.c.bf16 %v136, %v136
    %v152 = vpack.c.bf16 %v135, %v135
    %v153 = vpack.c.bf16 %v137, %v137
    %v154 = vld [vmem:[#allocation7] sm:$0xff]
    %v155 = vld [vmem:[#allocation7 + $0x8] sm:$0xff]
    %v156 = vld [vmem:[#allocation7 + $0x10] sm:$0xff]
    %v157 = vld [vmem:[#allocation7 + $0x18] sm:$0xff]
    %v158 = vld [vmem:[#allocation7 + $0x20] sm:$0xff]
    %v159 = vld [vmem:[#allocation7 + $0x28] sm:$0xff]
    %v160 = vld [vmem:[#allocation7 + $0x30] sm:$0xff]
    %v161 = vld [vmem:[#allocation7 + $0x38] sm:$0xff]
    %v162 = vld [vmem:[#allocation7 + $0x40] sm:$0xff]
    %v163 = vld [vmem:[#allocation7 + $0x48] sm:$0xff]
    %v164 = vld [vmem:[#allocation7 + $0x50] sm:$0xff]
    %v165 = vld [vmem:[#allocation7 + $0x58] sm:$0xff]
    %v166 = vld [vmem:[#allocation7 + $0x60] sm:$0xff]
    %v167 = vld [vmem:[#allocation7 + $0x68] sm:$0xff]
    %v168 = vld [vmem:[#allocation7 + $0x70] sm:$0xff]
    %v169 = vld [vmem:[#allocation7 + $0x78] sm:$0xff]
    %v170 = vld [vmem:[#allocation7 + $0x80] sm:$0xff]
    %v171 = vld [vmem:[#allocation7 + $0x88] sm:$0xff]
    %v172 = vld [vmem:[#allocation7 + $0x90] sm:$0xff]
    %v173 = vld [vmem:[#allocation7 + $0x98] sm:$0xff]
    %v174 = vld [vmem:[#allocation7 + $0xa0] sm:$0xff]
    %v175 = vld [vmem:[#allocation7 + $0xa8] sm:$0xff]
    %v176 = vld [vmem:[#allocation7 + $0xb0] sm:$0xff]
    %v177 = vld [vmem:[#allocation7 + $0xb8] sm:$0xff]
    %v178 = vld [vmem:[#allocation7 + $0xc0] sm:$0xff]
    %v179 = vld [vmem:[#allocation7 + $0xc8] sm:$0xff]
    %v180 = vld [vmem:[#allocation7 + $0xd0] sm:$0xff]
    %v181 = vld [vmem:[#allocation7 + $0xd8] sm:$0xff]
    %v182 = vld [vmem:[#allocation7 + $0xe0] sm:$0xff]
    %v183 = vld [vmem:[#allocation7 + $0xe8] sm:$0xff]
    %v184 = vld [vmem:[#allocation7 + $0xf0] sm:$0xff]
    %v185 = vld [vmem:[#allocation7 + $0xf8] sm:$0xff]
    %v186 = vld [vmem:[#allocation7 + $0x100] sm:$0xff]
    %v187 = vld [vmem:[#allocation7 + $0x108] sm:$0xff]
    %v188 = vld [vmem:[#allocation7 + $0x110] sm:$0xff]
    %v189 = vld [vmem:[#allocation7 + $0x118] sm:$0xff]
    %v190 = vld [vmem:[#allocation7 + $0x120] sm:$0xff]
    %v191 = vld [vmem:[#allocation7 + $0x128] sm:$0xff]
    %v192 = vld [vmem:[#allocation7 + $0x130] sm:$0xff]
    %v193 = vld [vmem:[#allocation7 + $0x138] sm:$0xff]
    %v194 = vld [vmem:[#allocation7 + $0x140] sm:$0xff]
    %v195 = vld [vmem:[#allocation7 + $0x148] sm:$0xff]
    %v196 = vld [vmem:[#allocation7 + $0x150] sm:$0xff]
    %v197 = vld [vmem:[#allocation7 + $0x158] sm:$0xff]
    %v198 = vld [vmem:[#allocation7 + $0x160] sm:$0xff]
    %v199 = vld [vmem:[#allocation7 + $0x168] sm:$0xff]
    %v200 = vld [vmem:[#allocation7 + $0x170] sm:$0xff]
    %v201 = vld [vmem:[#allocation7 + $0x178] sm:$0xff]
    %v202 = vld [vmem:[#allocation7 + $0x180] sm:$0xff]
    %v203 = vld [vmem:[#allocation7 + $0x188] sm:$0xff]
    %v204 = vld [vmem:[#allocation7 + $0x190] sm:$0xff]
    %v205 = vld [vmem:[#allocation7 + $0x198] sm:$0xff]
    %v206 = vld [vmem:[#allocation7 + $0x1a0] sm:$0xff]
    %v207 = vld [vmem:[#allocation7 + $0x1a8] sm:$0xff]
    %v208 = vld [vmem:[#allocation7 + $0x1b0] sm:$0xff]
    %v209 = vld [vmem:[#allocation7 + $0x1b8] sm:$0xff]
    %v210 = vld [vmem:[#allocation7 + $0x1c0] sm:$0xff]
    %v211 = vld [vmem:[#allocation7 + $0x1c8] sm:$0xff]
    %v212 = vld [vmem:[#allocation7 + $0x1d0] sm:$0xff]
    %v213 = vld [vmem:[#allocation7 + $0x1d8] sm:$0xff]
    %v214 = vld [vmem:[#allocation7 + $0x1e0] sm:$0xff]
    %v215 = vld [vmem:[#allocation7 + $0x1e8] sm:$0xff]
    %v216 = vld [vmem:[#allocation7 + $0x1f0] sm:$0xff]
    %v217 = vld [vmem:[#allocation7 + $0x1f8] sm:$0xff]
    %v218 = vld [vmem:[#allocation7 + $0x200] sm:$0xff]
    %v219 = vld [vmem:[#allocation7 + $0x208] sm:$0xff]
    %v220 = vld [vmem:[#allocation7 + $0x210] sm:$0xff]
    %v221 = vld [vmem:[#allocation7 + $0x218] sm:$0xff]
    %v222 = vld [vmem:[#allocation7 + $0x220] sm:$0xff]
    %v223 = vld [vmem:[#allocation7 + $0x228] sm:$0xff]
    %v224 = vld [vmem:[#allocation7 + $0x230] sm:$0xff]
    %v225 = vld [vmem:[#allocation7 + $0x238] sm:$0xff]
    %v226 = vld [vmem:[#allocation7 + $0x240] sm:$0xff]
    %v227 = vld [vmem:[#allocation7 + $0x248] sm:$0xff]
    %v228 = vld [vmem:[#allocation7 + $0x250] sm:$0xff]
    %v229 = vld [vmem:[#allocation7 + $0x258] sm:$0xff]
    %v230 = vld [vmem:[#allocation7 + $0x260] sm:$0xff]
    %v231 = vld [vmem:[#allocation7 + $0x268] sm:$0xff]
    %v232 = vld [vmem:[#allocation7 + $0x270] sm:$0xff]
    %v233 = vld [vmem:[#allocation7 + $0x278] sm:$0xff]
    %v234 = vld [vmem:[#allocation7 + $0x280] sm:$0xff]
    %v235 = vld [vmem:[#allocation7 + $0x288] sm:$0xff]
    %v236 = vld [vmem:[#allocation7 + $0x290] sm:$0xff]
    %v237 = vld [vmem:[#allocation7 + $0x298] sm:$0xff]
    %v238 = vld [vmem:[#allocation7 + $0x2a0] sm:$0xff]
    %v239 = vld [vmem:[#allocation7 + $0x2a8] sm:$0xff]
    %v240 = vld [vmem:[#allocation7 + $0x2b0] sm:$0xff]
    %v241 = vld [vmem:[#allocation7 + $0x2b8] sm:$0xff]
    %v242 = vld [vmem:[#allocation7 + $0x2c0] sm:$0xff]
    %v243 = vld [vmem:[#allocation7 + $0x2c8] sm:$0xff]
    %v244 = vld [vmem:[#allocation7 + $0x2d0] sm:$0xff]
    %v245 = vld [vmem:[#allocation7 + $0x2d8] sm:$0xff]
    %v246 = vld [vmem:[#allocation7 + $0x2e0] sm:$0xff]
    %v247 = vld [vmem:[#allocation7 + $0x2e8] sm:$0xff]
    %v248 = vld [vmem:[#allocation7 + $0x2f0] sm:$0xff]
    %v249 = vld [vmem:[#allocation7 + $0x2f8] sm:$0xff]
    %v250 = vld [vmem:[#allocation7 + $0x300] sm:$0xff]
    %v251 = vld [vmem:[#allocation7 + $0x308] sm:$0xff]
    %v252 = vld [vmem:[#allocation7 + $0x310] sm:$0xff]
    %v253 = vld [vmem:[#allocation7 + $0x318] sm:$0xff]
    %v254 = vld [vmem:[#allocation7 + $0x320] sm:$0xff]
    %v255 = vld [vmem:[#allocation7 + $0x328] sm:$0xff]
    %v256 = vld [vmem:[#allocation7 + $0x330] sm:$0xff]
    %v257 = vld [vmem:[#allocation7 + $0x338] sm:$0xff]
    %v258 = vld [vmem:[#allocation7 + $0x340] sm:$0xff]
    %v259 = vld [vmem:[#allocation7 + $0x348] sm:$0xff]
    %v260 = vld [vmem:[#allocation7 + $0x350] sm:$0xff]
    %v261 = vld [vmem:[#allocation7 + $0x358] sm:$0xff]
    %v262 = vld [vmem:[#allocation7 + $0x360] sm:$0xff]
    %v263 = vld [vmem:[#allocation7 + $0x368] sm:$0xff]
    %v264 = vld [vmem:[#allocation7 + $0x370] sm:$0xff]
    %v265 = vld [vmem:[#allocation7 + $0x378] sm:$0xff]
    %v266 = vld [vmem:[#allocation7 + $0x380] sm:$0xff]
    %v267 = vld [vmem:[#allocation7 + $0x388] sm:$0xff]
    %v268 = vld [vmem:[#allocation7 + $0x390] sm:$0xff]
    %v269 = vld [vmem:[#allocation7 + $0x398] sm:$0xff]
    %v270 = vld [vmem:[#allocation7 + $0x3a0] sm:$0xff]
    %v271 = vld [vmem:[#allocation7 + $0x3a8] sm:$0xff]
    %v272 = vld [vmem:[#allocation7 + $0x3b0] sm:$0xff]
    %v273 = vld [vmem:[#allocation7 + $0x3b8] sm:$0xff]
    %v274 = vld [vmem:[#allocation7 + $0x3c0] sm:$0xff]
    %v275 = vld [vmem:[#allocation7 + $0x3c8] sm:$0xff]
    %v276 = vld [vmem:[#allocation7 + $0x3d0] sm:$0xff]
    %v277 = vld [vmem:[#allocation7 + $0x3d8] sm:$0xff]
    %v278 = vld [vmem:[#allocation7 + $0x3e0] sm:$0xff]
    %v279 = vld [vmem:[#allocation7 + $0x3e8] sm:$0xff]
    %v280 = vld [vmem:[#allocation7 + $0x3f0] sm:$0xff]
    %v281 = vld [vmem:[#allocation7 + $0x3f8] sm:$0xff]
    %v282 = vld [vmem:[%s3] sm:$0x3]
    %v284 = vlaneseq
    %v285 = vshrl.u32 %v284, 7
    %v286 = vsub.s32 0, %v285
    %v287 = vrot.slane %v282, %v286
    %v288 = vlaneseq
    %v289 = vshrl.u32 %v288, 7
    %v290 = vsub.s32 1, %v289
    %v291 = vrot.slane %v282, %v290
    %v422 = vunpack.c.l.b16 %v154
    %v423 = vunpack.c.h.b16 %v154
    %v424 = vunpack.c.l.b16 %v155
    %v425 = vunpack.c.h.b16 %v155
    %v426 = vunpack.c.l.b16 %v156
    %v427 = vunpack.c.h.b16 %v156
    %v428 = vunpack.c.l.b16 %v157
    %v429 = vunpack.c.h.b16 %v157
    %v430 = vunpack.c.l.b16 %v158
    %v431 = vunpack.c.h.b16 %v158
    %v432 = vunpack.c.l.b16 %v159
    %v433 = vunpack.c.h.b16 %v159
    %v434 = vunpack.c.l.b16 %v160
    %v435 = vunpack.c.h.b16 %v160
    %v436 = vunpack.c.l.b16 %v161
    %v437 = vunpack.c.h.b16 %v161
    %v438 = vunpack.c.l.b16 %v162
    %v439 = vunpack.c.h.b16 %v162
    %v440 = vunpack.c.l.b16 %v163
    %v441 = vunpack.c.h.b16 %v163
    %v442 = vunpack.c.l.b16 %v164
    %v443 = vunpack.c.h.b16 %v164
    %v444 = vunpack.c.l.b16 %v165
    %v445 = vunpack.c.h.b16 %v165
    %v446 = vunpack.c.l.b16 %v166
    %v447 = vunpack.c.h.b16 %v166
    %v448 = vunpack.c.l.b16 %v167
    %v449 = vunpack.c.h.b16 %v167
    %v450 = vunpack.c.l.b16 %v168
    %v451 = vunpack.c.h.b16 %v168
    %v452 = vunpack.c.l.b16 %v169
    %v453 = vunpack.c.h.b16 %v169
    %v454 = vunpack.c.l.b16 %v170
    %v455 = vunpack.c.h.b16 %v170
    %v456 = vunpack.c.l.b16 %v171
    %v457 = vunpack.c.h.b16 %v171
    %v458 = vunpack.c.l.b16 %v172
    %v459 = vunpack.c.h.b16 %v172
    %v460 = vunpack.c.l.b16 %v173
    %v461 = vunpack.c.h.b16 %v173
    %v462 = vunpack.c.l.b16 %v174
    %v463 = vunpack.c.h.b16 %v174
    %v464 = vunpack.c.l.b16 %v175
    %v465 = vunpack.c.h.b16 %v175
    %v466 = vunpack.c.l.b16 %v176
    %v467 = vunpack.c.h.b16 %v176
    %v468 = vunpack.c.l.b16 %v177
    %v469 = vunpack.c.h.b16 %v177
    %v470 = vunpack.c.l.b16 %v178
    %v471 = vunpack.c.h.b16 %v178
    %v472 = vunpack.c.l.b16 %v179
    %v473 = vunpack.c.h.b16 %v179
    %v474 = vunpack.c.l.b16 %v180
    %v475 = vunpack.c.h.b16 %v180
    %v476 = vunpack.c.l.b16 %v181
    %v477 = vunpack.c.h.b16 %v181
    %v478 = vunpack.c.l.b16 %v182
    %v479 = vunpack.c.h.b16 %v182
    %v480 = vunpack.c.l.b16 %v183
    %v481 = vunpack.c.h.b16 %v183
    %v482 = vunpack.c.l.b16 %v184
    %v483 = vunpack.c.h.b16 %v184
    %v484 = vunpack.c.l.b16 %v185
    %v485 = vunpack.c.h.b16 %v185
    %v486 = vunpack.c.l.b16 %v186
    %v487 = vunpack.c.h.b16 %v186
    %v488 = vunpack.c.l.b16 %v187
    %v489 = vunpack.c.h.b16 %v187
    %v490 = vunpack.c.l.b16 %v188
    %v491 = vunpack.c.h.b16 %v188
    %v492 = vunpack.c.l.b16 %v189
    %v493 = vunpack.c.h.b16 %v189
    %v494 = vunpack.c.l.b16 %v190
    %v495 = vunpack.c.h.b16 %v190
    %v496 = vunpack.c.l.b16 %v191
    %v497 = vunpack.c.h.b16 %v191
    %v498 = vunpack.c.l.b16 %v192
    %v499 = vunpack.c.h.b16 %v192
    %v500 = vunpack.c.l.b16 %v193
    %v501 = vunpack.c.h.b16 %v193
    %v502 = vunpack.c.l.b16 %v194
    %v503 = vunpack.c.h.b16 %v194
    %v504 = vunpack.c.l.b16 %v195
    %v505 = vunpack.c.h.b16 %v195
    %v506 = vunpack.c.l.b16 %v196
    %v507 = vunpack.c.h.b16 %v196
    %v508 = vunpack.c.l.b16 %v197
    %v509 = vunpack.c.h.b16 %v197
    %v510 = vunpack.c.l.b16 %v198
    %v511 = vunpack.c.h.b16 %v198
    %v512 = vunpack.c.l.b16 %v199
    %v513 = vunpack.c.h.b16 %v199
    %v514 = vunpack.c.l.b16 %v200
    %v515 = vunpack.c.h.b16 %v200
    %v516 = vunpack.c.l.b16 %v201
    %v517 = vunpack.c.h.b16 %v201
    %v518 = vunpack.c.l.b16 %v202
    %v519 = vunpack.c.h.b16 %v202
    %v520 = vunpack.c.l.b16 %v203
    %v521 = vunpack.c.h.b16 %v203
    %v522 = vunpack.c.l.b16 %v204
    %v523 = vunpack.c.h.b16 %v204
    %v524 = vunpack.c.l.b16 %v205
    %v525 = vunpack.c.h.b16 %v205
    %v526 = vunpack.c.l.b16 %v206
    %v527 = vunpack.c.h.b16 %v206
    %v528 = vunpack.c.l.b16 %v207
    %v529 = vunpack.c.h.b16 %v207
    %v530 = vunpack.c.l.b16 %v208
    %v531 = vunpack.c.h.b16 %v208
    %v532 = vunpack.c.l.b16 %v209
    %v533 = vunpack.c.h.b16 %v209
    %v534 = vunpack.c.l.b16 %v210
    %v535 = vunpack.c.h.b16 %v210
    %v536 = vunpack.c.l.b16 %v211
    %v537 = vunpack.c.h.b16 %v211
    %v538 = vunpack.c.l.b16 %v212
    %v539 = vunpack.c.h.b16 %v212
    %v540 = vunpack.c.l.b16 %v213
    %v541 = vunpack.c.h.b16 %v213
    %v542 = vunpack.c.l.b16 %v214
    %v543 = vunpack.c.h.b16 %v214
    %v544 = vunpack.c.l.b16 %v215
    %v545 = vunpack.c.h.b16 %v215
    %v546 = vunpack.c.l.b16 %v216
    %v547 = vunpack.c.h.b16 %v216
    %v548 = vunpack.c.l.b16 %v217
    %v549 = vunpack.c.h.b16 %v217
    %v550 = vunpack.c.l.b16 %v218
    %v551 = vunpack.c.h.b16 %v218
    %v552 = vunpack.c.l.b16 %v219
    %v553 = vunpack.c.h.b16 %v219
    %v554 = vunpack.c.l.b16 %v220
    %v555 = vunpack.c.h.b16 %v220
    %v556 = vunpack.c.l.b16 %v221
    %v557 = vunpack.c.h.b16 %v221
    %v558 = vunpack.c.l.b16 %v222
    %v559 = vunpack.c.h.b16 %v222
    %v560 = vunpack.c.l.b16 %v223
    %v561 = vunpack.c.h.b16 %v223
    %v562 = vunpack.c.l.b16 %v224
    %v563 = vunpack.c.h.b16 %v224
    %v564 = vunpack.c.l.b16 %v225
    %v565 = vunpack.c.h.b16 %v225
    %v566 = vunpack.c.l.b16 %v226
    %v567 = vunpack.c.h.b16 %v226
    %v568 = vunpack.c.l.b16 %v227
    %v569 = vunpack.c.h.b16 %v227
    %v570 = vunpack.c.l.b16 %v228
    %v571 = vunpack.c.h.b16 %v228
    %v572 = vunpack.c.l.b16 %v229
    %v573 = vunpack.c.h.b16 %v229
    %v574 = vunpack.c.l.b16 %v230
    %v575 = vunpack.c.h.b16 %v230
    %v576 = vunpack.c.l.b16 %v231
    %v577 = vunpack.c.h.b16 %v231
    %v578 = vunpack.c.l.b16 %v232
    %v579 = vunpack.c.h.b16 %v232
    %v580 = vunpack.c.l.b16 %v233
    %v581 = vunpack.c.h.b16 %v233
    %v582 = vunpack.c.l.b16 %v234
    %v583 = vunpack.c.h.b16 %v234
    %v584 = vunpack.c.l.b16 %v235
    %v585 = vunpack.c.h.b16 %v235
    %v586 = vunpack.c.l.b16 %v236
    %v587 = vunpack.c.h.b16 %v236
    %v588 = vunpack.c.l.b16 %v237
    %v589 = vunpack.c.h.b16 %v237
    %v590 = vunpack.c.l.b16 %v238
    %v591 = vunpack.c.h.b16 %v238
    %v592 = vunpack.c.l.b16 %v239
    %v593 = vunpack.c.h.b16 %v239
    %v594 = vunpack.c.l.b16 %v240
    %v595 = vunpack.c.h.b16 %v240
    %v596 = vunpack.c.l.b16 %v241
    %v597 = vunpack.c.h.b16 %v241
    %v598 = vunpack.c.l.b16 %v242
    %v599 = vunpack.c.h.b16 %v242
    %v600 = vunpack.c.l.b16 %v243
    %v601 = vunpack.c.h.b16 %v243
    %v602 = vunpack.c.l.b16 %v244
    %v603 = vunpack.c.h.b16 %v244
    %v604 = vunpack.c.l.b16 %v245
    %v605 = vunpack.c.h.b16 %v245
    %v606 = vunpack.c.l.b16 %v246
    %v607 = vunpack.c.h.b16 %v246
    %v608 = vunpack.c.l.b16 %v247
    %v609 = vunpack.c.h.b16 %v247
    %v610 = vunpack.c.l.b16 %v248
    %v611 = vunpack.c.h.b16 %v248
    %v612 = vunpack.c.l.b16 %v249
    %v613 = vunpack.c.h.b16 %v249
    %v614 = vunpack.c.l.b16 %v250
    %v615 = vunpack.c.h.b16 %v250
    %v616 = vunpack.c.l.b16 %v251
    %v617 = vunpack.c.h.b16 %v251
    %v618 = vunpack.c.l.b16 %v252
    %v619 = vunpack.c.h.b16 %v252
    %v620 = vunpack.c.l.b16 %v253
    %v621 = vunpack.c.h.b16 %v253
    %v622 = vunpack.c.l.b16 %v254
    %v623 = vunpack.c.h.b16 %v254
    %v624 = vunpack.c.l.b16 %v255
    %v625 = vunpack.c.h.b16 %v255
    %v626 = vunpack.c.l.b16 %v256
    %v627 = vunpack.c.h.b16 %v256
    %v628 = vunpack.c.l.b16 %v257
    %v629 = vunpack.c.h.b16 %v257
    %v630 = vunpack.c.l.b16 %v258
    %v631 = vunpack.c.h.b16 %v258
    %v632 = vunpack.c.l.b16 %v259
    %v633 = vunpack.c.h.b16 %v259
    %v634 = vunpack.c.l.b16 %v260
    %v635 = vunpack.c.h.b16 %v260
    %v636 = vunpack.c.l.b16 %v261
    %v637 = vunpack.c.h.b16 %v261
    %v638 = vunpack.c.l.b16 %v262
    %v639 = vunpack.c.h.b16 %v262
    %v640 = vunpack.c.l.b16 %v263
    %v641 = vunpack.c.h.b16 %v263
    %v642 = vunpack.c.l.b16 %v264
    %v643 = vunpack.c.h.b16 %v264
    %v644 = vunpack.c.l.b16 %v265
    %v645 = vunpack.c.h.b16 %v265
    %v646 = vunpack.c.l.b16 %v266
    %v647 = vunpack.c.h.b16 %v266
    %v648 = vunpack.c.l.b16 %v267
    %v649 = vunpack.c.h.b16 %v267
    %v650 = vunpack.c.l.b16 %v268
    %v651 = vunpack.c.h.b16 %v268
    %v652 = vunpack.c.l.b16 %v269
    %v653 = vunpack.c.h.b16 %v269
    %v654 = vunpack.c.l.b16 %v270
    %v655 = vunpack.c.h.b16 %v270
    %v656 = vunpack.c.l.b16 %v271
    %v657 = vunpack.c.h.b16 %v271
    %v658 = vunpack.c.l.b16 %v272
    %v659 = vunpack.c.h.b16 %v272
    %v660 = vunpack.c.l.b16 %v273
    %v661 = vunpack.c.h.b16 %v273
    %v662 = vunpack.c.l.b16 %v274
    %v663 = vunpack.c.h.b16 %v274
    %v664 = vunpack.c.l.b16 %v275
    %v665 = vunpack.c.h.b16 %v275
    %v666 = vunpack.c.l.b16 %v276
    %v667 = vunpack.c.h.b16 %v276
    %v668 = vunpack.c.l.b16 %v277
    %v669 = vunpack.c.h.b16 %v277
    %v670 = vunpack.c.l.b16 %v278
    %v671 = vunpack.c.h.b16 %v278
    %v672 = vunpack.c.l.b16 %v279
    %v673 = vunpack.c.h.b16 %v279
    %v674 = vunpack.c.l.b16 %v280
    %v675 = vunpack.c.h.b16 %v280
    %v676 = vunpack.c.l.b16 %v281
    %v677 = vunpack.c.h.b16 %v281
    %v678 = vpack.c.b16 %v424, %v422
    %v679 = vpack.c.b16 %v425, %v423
    %v680 = vpack.c.b16 %v428, %v426
    %v681 = vpack.c.b16 %v429, %v427
    %v682 = vpack.c.b16 %v432, %v430
    %v683 = vpack.c.b16 %v433, %v431
    %v684 = vpack.c.b16 %v436, %v434
    %v685 = vpack.c.b16 %v437, %v435
    %v686 = vpack.c.b16 %v440, %v438
    %v687 = vpack.c.b16 %v441, %v439
    %v688 = vpack.c.b16 %v444, %v442
    %v689 = vpack.c.b16 %v445, %v443
    %v690 = vpack.c.b16 %v448, %v446
    %v691 = vpack.c.b16 %v449, %v447
    %v692 = vpack.c.b16 %v452, %v450
    %v693 = vpack.c.b16 %v453, %v451
    %v694 = vpack.c.b16 %v456, %v454
    %v695 = vpack.c.b16 %v457, %v455
    %v696 = vpack.c.b16 %v460, %v458
    %v697 = vpack.c.b16 %v461, %v459
    %v698 = vpack.c.b16 %v464, %v462
    %v699 = vpack.c.b16 %v465, %v463
    %v700 = vpack.c.b16 %v468, %v466
    %v701 = vpack.c.b16 %v469, %v467
    %v702 = vpack.c.b16 %v472, %v470
    %v703 = vpack.c.b16 %v473, %v471
    %v704 = vpack.c.b16 %v476, %v474
    %v705 = vpack.c.b16 %v477, %v475
    %v706 = vpack.c.b16 %v480, %v478
    %v707 = vpack.c.b16 %v481, %v479
    %v708 = vpack.c.b16 %v484, %v482
    %v709 = vpack.c.b16 %v485, %v483
    %v710 = vpack.c.b16 %v488, %v486
    %v711 = vpack.c.b16 %v489, %v487
    %v712 = vpack.c.b16 %v492, %v490
    %v713 = vpack.c.b16 %v493, %v491
    %v714 = vpack.c.b16 %v496, %v494
    %v715 = vpack.c.b16 %v497, %v495
    %v716 = vpack.c.b16 %v500, %v498
    %v717 = vpack.c.b16 %v501, %v499
    %v718 = vpack.c.b16 %v504, %v502
    %v719 = vpack.c.b16 %v505, %v503
    %v720 = vpack.c.b16 %v508, %v506
    %v721 = vpack.c.b16 %v509, %v507
    %v722 = vpack.c.b16 %v512, %v510
    %v723 = vpack.c.b16 %v513, %v511
    %v724 = vpack.c.b16 %v516, %v514
    %v725 = vpack.c.b16 %v517, %v515
    %v726 = vpack.c.b16 %v520, %v518
    %v727 = vpack.c.b16 %v521, %v519
    %v728 = vpack.c.b16 %v524, %v522
    %v729 = vpack.c.b16 %v525, %v523
    %v730 = vpack.c.b16 %v528, %v526
    %v731 = vpack.c.b16 %v529, %v527
    %v732 = vpack.c.b16 %v532, %v530
    %v733 = vpack.c.b16 %v533, %v531
    %v734 = vpack.c.b16 %v536, %v534
    %v735 = vpack.c.b16 %v537, %v535
    %v736 = vpack.c.b16 %v540, %v538
    %v737 = vpack.c.b16 %v541, %v539
    %v738 = vpack.c.b16 %v544, %v542
    %v739 = vpack.c.b16 %v545, %v543
    %v740 = vpack.c.b16 %v548, %v546
    %v741 = vpack.c.b16 %v549, %v547
    %v742 = vpack.c.b16 %v552, %v550
    %v743 = vpack.c.b16 %v553, %v551
    %v744 = vpack.c.b16 %v556, %v554
    %v745 = vpack.c.b16 %v557, %v555
    %v746 = vpack.c.b16 %v560, %v558
    %v747 = vpack.c.b16 %v561, %v559
    %v748 = vpack.c.b16 %v564, %v562
    %v749 = vpack.c.b16 %v565, %v563
    %v750 = vpack.c.b16 %v568, %v566
    %v751 = vpack.c.b16 %v569, %v567
    %v752 = vpack.c.b16 %v572, %v570
    %v753 = vpack.c.b16 %v573, %v571
    %v754 = vpack.c.b16 %v576, %v574
    %v755 = vpack.c.b16 %v577, %v575
    %v756 = vpack.c.b16 %v580, %v578
    %v757 = vpack.c.b16 %v581, %v579
    %v758 = vpack.c.b16 %v584, %v582
    %v759 = vpack.c.b16 %v585, %v583
    %v760 = vpack.c.b16 %v588, %v586
    %v761 = vpack.c.b16 %v589, %v587
    %v762 = vpack.c.b16 %v592, %v590
    %v763 = vpack.c.b16 %v593, %v591
    %v764 = vpack.c.b16 %v596, %v594
    %v765 = vpack.c.b16 %v597, %v595
    %v766 = vpack.c.b16 %v600, %v598
    %v767 = vpack.c.b16 %v601, %v599
    %v768 = vpack.c.b16 %v604, %v602
    %v769 = vpack.c.b16 %v605, %v603
    %v770 = vpack.c.b16 %v608, %v606
    %v771 = vpack.c.b16 %v609, %v607
    %v772 = vpack.c.b16 %v612, %v610
    %v773 = vpack.c.b16 %v613, %v611
    %v774 = vpack.c.b16 %v616, %v614
    %v775 = vpack.c.b16 %v617, %v615
    %v776 = vpack.c.b16 %v620, %v618
    %v777 = vpack.c.b16 %v621, %v619
    %v778 = vpack.c.b16 %v624, %v622
    %v779 = vpack.c.b16 %v625, %v623
    %v780 = vpack.c.b16 %v628, %v626
    %v781 = vpack.c.b16 %v629, %v627
    %v782 = vpack.c.b16 %v632, %v630
    %v783 = vpack.c.b16 %v633, %v631
    %v784 = vpack.c.b16 %v636, %v634
    %v785 = vpack.c.b16 %v637, %v635
    %v786 = vpack.c.b16 %v640, %v638
    %v787 = vpack.c.b16 %v641, %v639
    %v788 = vpack.c.b16 %v644, %v642
    %v789 = vpack.c.b16 %v645, %v643
    %v790 = vpack.c.b16 %v648, %v646
    %v791 = vpack.c.b16 %v649, %v647
    %v792 = vpack.c.b16 %v652, %v650
    %v793 = vpack.c.b16 %v653, %v651
    %v794 = vpack.c.b16 %v656, %v654
    %v795 = vpack.c.b16 %v657, %v655
    %v796 = vpack.c.b16 %v660, %v658
    %v797 = vpack.c.b16 %v661, %v659
    %v798 = vpack.c.b16 %v664, %v662
    %v799 = vpack.c.b16 %v665, %v663
    %v800 = vpack.c.b16 %v668, %v666
    %v801 = vpack.c.b16 %v669, %v667
    %v802 = vpack.c.b16 %v672, %v670
    %v803 = vpack.c.b16 %v673, %v671
    %v804 = vpack.c.b16 %v676, %v674
    %v805 = vpack.c.b16 %v677, %v675
    %934 = vmatprep.subr.bf16.mxu0 %v693
    %935 = vmatpush1.bf16.msra.mxu0 %v692
    %936 = vmatprep.subr.bf16.mxu0 %v691
    %937 = vmatpush1.bf16.msra.mxu0 %v690
    %938 = vmatprep.subr.bf16.mxu0 %v689
    %939 = vmatpush1.bf16.msra.mxu0 %v688
    %940 = vmatprep.subr.bf16.mxu0 %v687
    %941 = vmatpush1.bf16.msra.mxu0 %v686
    %942 = vmatprep.subr.bf16.mxu0 %v685
    %943 = vmatpush1.bf16.msra.mxu0 %v684
    %944 = vmatprep.subr.bf16.mxu0 %v683
    %945 = vmatpush1.bf16.msra.mxu0 %v682
    %946 = vmatprep.subr.bf16.mxu0 %v681
    %947 = vmatpush1.bf16.msra.mxu0 %v680
    %948 = vmatprep.subr.bf16.mxu0 %v679
    %949 = vmatpush1.bf16.msra.mxu0 %v678
    %950 = vmatprep.subr.bf16.mxu0 %v709
    %951 = vmatpush2.bf16.msra.mxu0 %v708
    %952 = vmatprep.subr.bf16.mxu0 %v707
    %953 = vmatpush2.bf16.msra.mxu0 %v706
    %954 = vmatprep.subr.bf16.mxu0 %v705
    %955 = vmatpush2.bf16.msra.mxu0 %v704
    %956 = vmatprep.subr.bf16.mxu0 %v703
    %957 = vmatpush2.bf16.msra.mxu0 %v702
    %958 = vmatprep.subr.bf16.mxu0 %v701
    %959 = vmatpush2.bf16.msra.mxu0 %v700
    %960 = vmatprep.subr.bf16.mxu0 %v699
    %961 = vmatpush2.bf16.msra.mxu0 %v698
    %962 = vmatprep.subr.bf16.mxu0 %v697
    %963 = vmatpush2.bf16.msra.mxu0 %v696
    %964 = vmatprep.subr.bf16.mxu0 %v695
    %965 = vmatpush2.bf16.msra.mxu0 %v694
    %966 = vmatprep.mubr.bf16.mxu0 %v147
    %967 = vmatmul.mubr.bf16.gmra.mxu0 %v146
    %v968 = vpop.f32.mrf.mxu0
    %v969 = vadd.f32 %v287, %v968
    %v970 = vpop.f32.mrf.mxu0
    %v971 = vadd.f32 %v291, %v970
    %v972 = vpop.f32.mrf.mxu0
    %v973 = vpop.f32.mrf.mxu0
    %974 = vdwg.mxu0
    %975 = vmatprep.subr.bf16.mxu0 %v725
    %976 = vmatpush1.bf16.msra.mxu0 %v724
    %977 = vmatprep.subr.bf16.mxu0 %v723
    %978 = vmatpush1.bf16.msra.mxu0 %v722
    %979 = vmatprep.subr.bf16.mxu0 %v721
    %980 = vmatpush1.bf16.msra.mxu0 %v720
    %981 = vmatprep.subr.bf16.mxu0 %v719
    %982 = vmatpush1.bf16.msra.mxu0 %v718
    %983 = vmatprep.subr.bf16.mxu0 %v717
    %984 = vmatpush1.bf16.msra.mxu0 %v716
    %985 = vmatprep.subr.bf16.mxu0 %v715
    %986 = vmatpush1.bf16.msra.mxu0 %v714
    %987 = vmatprep.subr.bf16.mxu0 %v713
    %988 = vmatpush1.bf16.msra.mxu0 %v712
    %989 = vmatprep.subr.bf16.mxu0 %v711
    %990 = vmatpush1.bf16.msra.mxu0 %v710
    %991 = vmatprep.subr.bf16.mxu0 %v741
    %992 = vmatpush2.bf16.msra.mxu0 %v740
    %993 = vmatprep.subr.bf16.mxu0 %v739
    %994 = vmatpush2.bf16.msra.mxu0 %v738
    %995 = vmatprep.subr.bf16.mxu0 %v737
    %996 = vmatpush2.bf16.msra.mxu0 %v736
    %997 = vmatprep.subr.bf16.mxu0 %v735
    %998 = vmatpush2.bf16.msra.mxu0 %v734
    %999 = vmatprep.subr.bf16.mxu0 %v733
    %1000 = vmatpush2.bf16.msra.mxu0 %v732
    %1001 = vmatprep.subr.bf16.mxu0 %v731
    %1002 = vmatpush2.bf16.msra.mxu0 %v730
    %1003 = vmatprep.subr.bf16.mxu0 %v729
    %1004 = vmatpush2.bf16.msra.mxu0 %v728
    %1005 = vmatprep.subr.bf16.mxu0 %v727
    %1006 = vmatpush2.bf16.msra.mxu0 %v726
    %1007 = vmatprep.mubr.bf16.mxu0 %v149
    %1008 = vmatmul.mubr.bf16.gmra.mxu0 %v148
    %v1009 = vpop.f32.mrf.mxu0
    %v1010 = vadd.f32 %v969, %v1009
    %v1011 = vpop.f32.mrf.mxu0
    %v1012 = vadd.f32 %v971, %v1011
    %v1013 = vpop.f32.mrf.mxu0
    %v1014 = vpop.f32.mrf.mxu0
    %1015 = vdwg.mxu0
    %1016 = vmatprep.subr.bf16.mxu0 %v757
    %1017 = vmatpush1.bf16.msra.mxu0 %v756
    %1018 = vmatprep.subr.bf16.mxu0 %v755
    %1019 = vmatpush1.bf16.msra.mxu0 %v754
    %1020 = vmatprep.subr.bf16.mxu0 %v753
    %1021 = vmatpush1.bf16.msra.mxu0 %v752
    %1022 = vmatprep.subr.bf16.mxu0 %v751
    %1023 = vmatpush1.bf16.msra.mxu0 %v750
    %1024 = vmatprep.subr.bf16.mxu0 %v749
    %1025 = vmatpush1.bf16.msra.mxu0 %v748
    %1026 = vmatprep.subr.bf16.mxu0 %v747
    %1027 = vmatpush1.bf16.msra.mxu0 %v746
    %1028 = vmatprep.subr.bf16.mxu0 %v745
    %1029 = vmatpush1.bf16.msra.mxu0 %v744
    %1030 = vmatprep.subr.bf16.mxu0 %v743
    %1031 = vmatpush1.bf16.msra.mxu0 %v742
    %1032 = vmatprep.subr.bf16.mxu0 %v773
    %1033 = vmatpush2.bf16.msra.mxu0 %v772
    %1034 = vmatprep.subr.bf16.mxu0 %v771
    %1035 = vmatpush2.bf16.msra.mxu0 %v770
    %1036 = vmatprep.subr.bf16.mxu0 %v769
    %1037 = vmatpush2.bf16.msra.mxu0 %v768
    %1038 = vmatprep.subr.bf16.mxu0 %v767
    %1039 = vmatpush2.bf16.msra.mxu0 %v766
    %1040 = vmatprep.subr.bf16.mxu0 %v765
    %1041 = vmatpush2.bf16.msra.mxu0 %v764
    %1042 = vmatprep.subr.bf16.mxu0 %v763
    %1043 = vmatpush2.bf16.msra.mxu0 %v762
    %1044 = vmatprep.subr.bf16.mxu0 %v761
    %1045 = vmatpush2.bf16.msra.mxu0 %v760
    %1046 = vmatprep.subr.bf16.mxu0 %v759
    %1047 = vmatpush2.bf16.msra.mxu0 %v758
    %1048 = vmatprep.mubr.bf16.mxu0 %v151
    %1049 = vmatmul.mubr.bf16.gmra.mxu0 %v150
    %v1050 = vpop.f32.mrf.mxu0
    %v1051 = vadd.f32 %v1010, %v1050
    %v1052 = vpop.f32.mrf.mxu0
    %v1053 = vadd.f32 %v1012, %v1052
    %v1054 = vpop.f32.mrf.mxu0
    %v1055 = vpop.f32.mrf.mxu0
    %1056 = vdwg.mxu0
    %1057 = vmatprep.subr.bf16.mxu0 %v789
    %1058 = vmatpush1.bf16.msra.mxu0 %v788
    %1059 = vmatprep.subr.bf16.mxu0 %v787
    %1060 = vmatpush1.bf16.msra.mxu0 %v786
    %1061 = vmatprep.subr.bf16.mxu0 %v785
    %1062 = vmatpush1.bf16.msra.mxu0 %v784
    %1063 = vmatprep.subr.bf16.mxu0 %v783
    %1064 = vmatpush1.bf16.msra.mxu0 %v782
    %1065 = vmatprep.subr.bf16.mxu0 %v781
    %1066 = vmatpush1.bf16.msra.mxu0 %v780
    %1067 = vmatprep.subr.bf16.mxu0 %v779
    %1068 = vmatpush1.bf16.msra.mxu0 %v778
    %1069 = vmatprep.subr.bf16.mxu0 %v777
    %1070 = vmatpush1.bf16.msra.mxu0 %v776
    %1071 = vmatprep.subr.bf16.mxu0 %v775
    %1072 = vmatpush1.bf16.msra.mxu0 %v774
    %1073 = vmatprep.subr.bf16.mxu0 %v805
    %1074 = vmatpush2.bf16.msra.mxu0 %v804
    %1075 = vmatprep.subr.bf16.mxu0 %v803
    %1076 = vmatpush2.bf16.msra.mxu0 %v802
    %1077 = vmatprep.subr.bf16.mxu0 %v801
    %1078 = vmatpush2.bf16.msra.mxu0 %v800
    %1079 = vmatprep.subr.bf16.mxu0 %v799
    %1080 = vmatpush2.bf16.msra.mxu0 %v798
    %1081 = vmatprep.subr.bf16.mxu0 %v797
    %1082 = vmatpush2.bf16.msra.mxu0 %v796
    %1083 = vmatprep.subr.bf16.mxu0 %v795
    %1084 = vmatpush2.bf16.msra.mxu0 %v794
    %1085 = vmatprep.subr.bf16.mxu0 %v793
    %1086 = vmatpush2.bf16.msra.mxu0 %v792
    %1087 = vmatprep.subr.bf16.mxu0 %v791
    %1088 = vmatpush2.bf16.msra.mxu0 %v790
    %1089 = vmatprep.mubr.bf16.mxu0 %v153
    %1090 = vmatmul.mubr.bf16.gmra.mxu0 %v152
    %v1091 = vpop.f32.mrf.mxu0
    %v1092 = vadd.f32 %v1051, %v1091
    %v1093 = vpop.f32.mrf.mxu0
    %v1094 = vadd.f32 %v1053, %v1093
    %v1095 = vpop.f32.mrf.mxu0
    %v1096 = vpop.f32.mrf.mxu0
    %1097 = vdwg.mxu0
    %v1098 = vmax.f32 %v1092, 0.0
    %v1099 = vmax.f32 %v1094, 0.0
    %v1100 = vpack.c.bf16 %v1098, %v1098
    %v1101 = vpack.c.bf16 %v1099, %v1099
    %v1102 = vld [vmem:[#allocation8] sm:$0xff]
    %v1103 = vld [vmem:[#allocation8 + $0x8] sm:$0xff]
    %v1104 = vld [vmem:[#allocation8 + $0x10] sm:$0xff]
    %v1105 = vld [vmem:[#allocation8 + $0x18] sm:$0xff]
    %v1106 = vld [vmem:[#allocation8 + $0x20] sm:$0xff]
    %v1107 = vld [vmem:[#allocation8 + $0x28] sm:$0xff]
    %v1108 = vld [vmem:[#allocation8 + $0x30] sm:$0xff]
    %v1109 = vld [vmem:[#allocation8 + $0x38] sm:$0xff]
    %v1110 = vld [vmem:[#allocation8 + $0x40] sm:$0xff]
    %v1111 = vld [vmem:[#allocation8 + $0x48] sm:$0xff]
    %v1112 = vld [vmem:[#allocation8 + $0x50] sm:$0xff]
    %v1113 = vld [vmem:[#allocation8 + $0x58] sm:$0xff]
    %v1114 = vld [vmem:[#allocation8 + $0x60] sm:$0xff]
    %v1115 = vld [vmem:[#allocation8 + $0x68] sm:$0xff]
    %v1116 = vld [vmem:[#allocation8 + $0x70] sm:$0xff]
    %v1117 = vld [vmem:[#allocation8 + $0x78] sm:$0xff]
    %v1118 = vld [vmem:[#allocation8 + $0x80] sm:$0xff]
    %v1119 = vld [vmem:[#allocation8 + $0x88] sm:$0xff]
    %v1120 = vld [vmem:[#allocation8 + $0x90] sm:$0xff]
    %v1121 = vld [vmem:[#allocation8 + $0x98] sm:$0xff]
    %v1122 = vld [vmem:[#allocation8 + $0xa0] sm:$0xff]
    %v1123 = vld [vmem:[#allocation8 + $0xa8] sm:$0xff]
    %v1124 = vld [vmem:[#allocation8 + $0xb0] sm:$0xff]
    %v1125 = vld [vmem:[#allocation8 + $0xb8] sm:$0xff]
    %v1126 = vld [vmem:[#allocation8 + $0xc0] sm:$0xff]
    %v1127 = vld [vmem:[#allocation8 + $0xc8] sm:$0xff]
    %v1128 = vld [vmem:[#allocation8 + $0xd0] sm:$0xff]
    %v1129 = vld [vmem:[#allocation8 + $0xd8] sm:$0xff]
    %v1130 = vld [vmem:[#allocation8 + $0xe0] sm:$0xff]
    %v1131 = vld [vmem:[#allocation8 + $0xe8] sm:$0xff]
    %v1132 = vld [vmem:[#allocation8 + $0xf0] sm:$0xff]
    %v1133 = vld [vmem:[#allocation8 + $0xf8] sm:$0xff]
    %v1134 = vld [vmem:[%s5] sm:$0x3]
    %v1136 = vlaneseq
    %v1137 = vshrl.u32 %v1136, 7
    %v1138 = vsub.s32 0, %v1137
    %v1139 = vrot.slane %v1134, %v1138
    %v1140 = vlaneseq
    %v1141 = vshrl.u32 %v1140, 7
    %v1142 = vsub.s32 1, %v1141
    %v1143 = vrot.slane %v1134, %v1142
    %v1178 = vunpack.c.l.b16 %v1102
    %v1179 = vunpack.c.h.b16 %v1102
    %v1180 = vunpack.c.l.b16 %v1103
    %v1181 = vunpack.c.h.b16 %v1103
    %v1182 = vunpack.c.l.b16 %v1104
    %v1183 = vunpack.c.h.b16 %v1104
    %v1184 = vunpack.c.l.b16 %v1105
    %v1185 = vunpack.c.h.b16 %v1105
    %v1186 = vunpack.c.l.b16 %v1106
    %v1187 = vunpack.c.h.b16 %v1106
    %v1188 = vunpack.c.l.b16 %v1107
    %v1189 = vunpack.c.h.b16 %v1107
    %v1190 = vunpack.c.l.b16 %v1108
    %v1191 = vunpack.c.h.b16 %v1108
    %v1192 = vunpack.c.l.b16 %v1109
    %v1193 = vunpack.c.h.b16 %v1109
    %v1194 = vunpack.c.l.b16 %v1110
    %v1195 = vunpack.c.h.b16 %v1110
    %v1196 = vunpack.c.l.b16 %v1111
    %v1197 = vunpack.c.h.b16 %v1111
    %v1198 = vunpack.c.l.b16 %v1112
    %v1199 = vunpack.c.h.b16 %v1112
    %v1200 = vunpack.c.l.b16 %v1113
    %v1201 = vunpack.c.h.b16 %v1113
    %v1202 = vunpack.c.l.b16 %v1114
    %v1203 = vunpack.c.h.b16 %v1114
    %v1204 = vunpack.c.l.b16 %v1115
    %v1205 = vunpack.c.h.b16 %v1115
    %v1206 = vunpack.c.l.b16 %v1116
    %v1207 = vunpack.c.h.b16 %v1116
    %v1208 = vunpack.c.l.b16 %v1117
    %v1209 = vunpack.c.h.b16 %v1117
    %v1210 = vunpack.c.l.b16 %v1118
    %v1211 = vunpack.c.h.b16 %v1118
    %v1212 = vunpack.c.l.b16 %v1119
    %v1213 = vunpack.c.h.b16 %v1119
    %v1214 = vunpack.c.l.b16 %v1120
    %v1215 = vunpack.c.h.b16 %v1120
    %v1216 = vunpack.c.l.b16 %v1121
    %v1217 = vunpack.c.h.b16 %v1121
    %v1218 = vunpack.c.l.b16 %v1122
    %v1219 = vunpack.c.h.b16 %v1122
    %v1220 = vunpack.c.l.b16 %v1123
    %v1221 = vunpack.c.h.b16 %v1123
    %v1222 = vunpack.c.l.b16 %v1124
    %v1223 = vunpack.c.h.b16 %v1124
    %v1224 = vunpack.c.l.b16 %v1125
    %v1225 = vunpack.c.h.b16 %v1125
    %v1226 = vunpack.c.l.b16 %v1126
    %v1227 = vunpack.c.h.b16 %v1126
    %v1228 = vunpack.c.l.b16 %v1127
    %v1229 = vunpack.c.h.b16 %v1127
    %v1230 = vunpack.c.l.b16 %v1128
    %v1231 = vunpack.c.h.b16 %v1128
    %v1232 = vunpack.c.l.b16 %v1129
    %v1233 = vunpack.c.h.b16 %v1129
    %v1234 = vunpack.c.l.b16 %v1130
    %v1235 = vunpack.c.h.b16 %v1130
    %v1236 = vunpack.c.l.b16 %v1131
    %v1237 = vunpack.c.h.b16 %v1131
    %v1238 = vunpack.c.l.b16 %v1132
    %v1239 = vunpack.c.h.b16 %v1132
    %v1240 = vunpack.c.l.b16 %v1133
    %v1241 = vunpack.c.h.b16 %v1133
    %v1242 = vpack.c.b16 %v1180, %v1178
    %v1243 = vpack.c.b16 %v1181, %v1179
    %v1244 = vpack.c.b16 %v1184, %v1182
    %v1245 = vpack.c.b16 %v1185, %v1183
    %v1246 = vpack.c.b16 %v1188, %v1186
    %v1247 = vpack.c.b16 %v1189, %v1187
    %v1248 = vpack.c.b16 %v1192, %v1190
    %v1249 = vpack.c.b16 %v1193, %v1191
    %v1250 = vpack.c.b16 %v1196, %v1194
    %v1251 = vpack.c.b16 %v1197, %v1195
    %v1252 = vpack.c.b16 %v1200, %v1198
    %v1253 = vpack.c.b16 %v1201, %v1199
    %v1254 = vpack.c.b16 %v1204, %v1202
    %v1255 = vpack.c.b16 %v1205, %v1203
    %v1256 = vpack.c.b16 %v1208, %v1206
    %v1257 = vpack.c.b16 %v1209, %v1207
    %v1258 = vpack.c.b16 %v1212, %v1210
    %v1259 = vpack.c.b16 %v1213, %v1211
    %v1260 = vpack.c.b16 %v1216, %v1214
    %v1261 = vpack.c.b16 %v1217, %v1215
    %v1262 = vpack.c.b16 %v1220, %v1218
    %v1263 = vpack.c.b16 %v1221, %v1219
    %v1264 = vpack.c.b16 %v1224, %v1222
    %v1265 = vpack.c.b16 %v1225, %v1223
    %v1266 = vpack.c.b16 %v1228, %v1226
    %v1267 = vpack.c.b16 %v1229, %v1227
    %v1268 = vpack.c.b16 %v1232, %v1230
    %v1269 = vpack.c.b16 %v1233, %v1231
    %v1270 = vpack.c.b16 %v1236, %v1234
    %v1271 = vpack.c.b16 %v1237, %v1235
    %v1272 = vpack.c.b16 %v1240, %v1238
    %v1273 = vpack.c.b16 %v1241, %v1239
    %1306 = vmatprep.subr.bf16.mxu0 %v1257
    %1307 = vmatpush1.bf16.msra.mxu0 %v1256
    %1308 = vmatprep.subr.bf16.mxu0 %v1255
    %1309 = vmatpush1.bf16.msra.mxu0 %v1254
    %1310 = vmatprep.subr.bf16.mxu0 %v1253
    %1311 = vmatpush1.bf16.msra.mxu0 %v1252
    %1312 = vmatprep.subr.bf16.mxu0 %v1251
    %1313 = vmatpush1.bf16.msra.mxu0 %v1250
    %1314 = vmatprep.subr.bf16.mxu0 %v1249
    %1315 = vmatpush1.bf16.msra.mxu0 %v1248
    %1316 = vmatprep.subr.bf16.mxu0 %v1247
    %1317 = vmatpush1.bf16.msra.mxu0 %v1246
    %1318 = vmatprep.subr.bf16.mxu0 %v1245
    %1319 = vmatpush1.bf16.msra.mxu0 %v1244
    %1320 = vmatprep.subr.bf16.mxu0 %v1243
    %1321 = vmatpush1.bf16.msra.mxu0 %v1242
    %1322 = vmatprep.subr.bf16.mxu0 %v1273
    %1323 = vmatpush2.bf16.msra.mxu0 %v1272
    %1324 = vmatprep.subr.bf16.mxu0 %v1271
    %1325 = vmatpush2.bf16.msra.mxu0 %v1270
    %1326 = vmatprep.subr.bf16.mxu0 %v1269
    %1327 = vmatpush2.bf16.msra.mxu0 %v1268
    %1328 = vmatprep.subr.bf16.mxu0 %v1267
    %1329 = vmatpush2.bf16.msra.mxu0 %v1266
    %1330 = vmatprep.subr.bf16.mxu0 %v1265
    %1331 = vmatpush2.bf16.msra.mxu0 %v1264
    %1332 = vmatprep.subr.bf16.mxu0 %v1263
    %1333 = vmatpush2.bf16.msra.mxu0 %v1262
    %1334 = vmatprep.subr.bf16.mxu0 %v1261
    %1335 = vmatpush2.bf16.msra.mxu0 %v1260
    %1336 = vmatprep.subr.bf16.mxu0 %v1259
    %1337 = vmatpush2.bf16.msra.mxu0 %v1258
    %1338 = vmatprep.mubr.bf16.mxu0 %v1101
    %1339 = vmatmul.mubr.bf16.gmra.mxu0 %v1100
    %v1340 = vpop.f32.mrf.mxu0
    %v1341 = vadd.f32 %v1139, %v1340
    %v1342 = vpop.f32.mrf.mxu0
    %v1343 = vadd.f32 %v1143, %v1342
    %v1344 = vpop.f32.mrf.mxu0
    %v1345 = vpop.f32.mrf.mxu0
    %1346 = vdwg.mxu0
    %v1347 = vmax.f32 %v1341, 0.0
    %v1348 = vmax.f32 %v1343, 0.0
    %v1349 = vpack.c.bf16 %v1347, %v1347
    %v1350 = vpack.c.bf16 %v1348, %v1348
    %v1351 = vld [vmem:[#allocation10] sm:$0xf]
    %v1352 = vld [vmem:[#allocation10 + $0x4] sm:$0xf]
    %v1353 = vld [vmem:[#allocation10 + $0x8] sm:$0xf]
    %v1354 = vld [vmem:[#allocation10 + $0xc] sm:$0xf]
    %v1355 = vld [vmem:[#allocation10 + $0x10] sm:$0xf]
    %v1356 = vld [vmem:[#allocation10 + $0x14] sm:$0xf]
    %v1357 = vld [vmem:[#allocation10 + $0x18] sm:$0xf]
    %v1358 = vld [vmem:[#allocation10 + $0x1c] sm:$0xf]
    %v1359 = vld [vmem:[#allocation10 + $0x20] sm:$0xf]
    %v1360 = vld [vmem:[#allocation10 + $0x24] sm:$0xf]
    %v1361 = vld [vmem:[#allocation10 + $0x28] sm:$0xf]
    %v1362 = vld [vmem:[#allocation10 + $0x2c] sm:$0xf]
    %v1363 = vld [vmem:[#allocation10 + $0x30] sm:$0xf]
    %v1364 = vld [vmem:[#allocation10 + $0x34] sm:$0xf]
    %v1365 = vld [vmem:[#allocation10 + $0x38] sm:$0xf]
    %v1366 = vld [vmem:[#allocation10 + $0x3c] sm:$0xf]
    %v1367 = vld [vmem:[#allocation10 + $0x40] sm:$0xf]
    %v1368 = vld [vmem:[#allocation10 + $0x44] sm:$0xf]
    %v1369 = vld [vmem:[#allocation10 + $0x48] sm:$0xf]
    %v1370 = vld [vmem:[#allocation10 + $0x4c] sm:$0xf]
    %v1371 = vld [vmem:[#allocation10 + $0x50] sm:$0xf]
    %v1372 = vld [vmem:[#allocation10 + $0x54] sm:$0xf]
    %v1373 = vld [vmem:[#allocation10 + $0x58] sm:$0xf]
    %v1374 = vld [vmem:[#allocation10 + $0x5c] sm:$0xf]
    %v1375 = vld [vmem:[#allocation10 + $0x60] sm:$0xf]
    %v1376 = vld [vmem:[#allocation10 + $0x64] sm:$0xf]
    %v1377 = vld [vmem:[#allocation10 + $0x68] sm:$0xf]
    %v1378 = vld [vmem:[#allocation10 + $0x6c] sm:$0xf]
    %v1379 = vld [vmem:[#allocation10 + $0x70] sm:$0xf]
    %v1380 = vld [vmem:[#allocation10 + $0x74] sm:$0xf]
    %v1381 = vld [vmem:[#allocation10 + $0x78] sm:$0xf]
    %v1382 = vld [vmem:[#allocation10 + $0x7c] sm:$0xf]
    %v1383 = vld [vmem:[%s7] sm:$0x1]
    %v1385 = vlaneseq
    %v1386 = vshrl.u32 %v1385, 7
    %v1387 = vsub.s32 0, %v1386
    %v1388 = vrot.slane %v1383, %v1387
    %v1422 = vunpack.c.l.b16 %v1351
    %v1423 = vunpack.c.l.b16 %v1352
    %v1424 = vunpack.c.l.b16 %v1353
    %v1425 = vunpack.c.l.b16 %v1354
    %v1426 = vunpack.c.l.b16 %v1355
    %v1427 = vunpack.c.l.b16 %v1356
    %v1428 = vunpack.c.l.b16 %v1357
    %v1429 = vunpack.c.l.b16 %v1358
    %v1430 = vunpack.c.l.b16 %v1359
    %v1431 = vunpack.c.l.b16 %v1360
    %v1432 = vunpack.c.l.b16 %v1361
    %v1433 = vunpack.c.l.b16 %v1362
    %v1434 = vunpack.c.l.b16 %v1363
    %v1435 = vunpack.c.l.b16 %v1364
    %v1436 = vunpack.c.l.b16 %v1365
    %v1437 = vunpack.c.l.b16 %v1366
    %v1438 = vunpack.c.l.b16 %v1367
    %v1439 = vunpack.c.l.b16 %v1368
    %v1440 = vunpack.c.l.b16 %v1369
    %v1441 = vunpack.c.l.b16 %v1370
    %v1442 = vunpack.c.l.b16 %v1371
    %v1443 = vunpack.c.l.b16 %v1372
    %v1444 = vunpack.c.l.b16 %v1373
    %v1445 = vunpack.c.l.b16 %v1374
    %v1446 = vunpack.c.l.b16 %v1375
    %v1447 = vunpack.c.l.b16 %v1376
    %v1448 = vunpack.c.l.b16 %v1377
    %v1449 = vunpack.c.l.b16 %v1378
    %v1450 = vunpack.c.l.b16 %v1379
    %v1451 = vunpack.c.l.b16 %v1380
    %v1452 = vunpack.c.l.b16 %v1381
    %v1453 = vunpack.c.l.b16 %v1382
    %v1454 = vpack.c.b16 %v1423, %v1422
    %v1455 = vpack.c.b16 %v1425, %v1424
    %v1456 = vpack.c.b16 %v1427, %v1426
    %v1457 = vpack.c.b16 %v1429, %v1428
    %v1458 = vpack.c.b16 %v1431, %v1430
    %v1459 = vpack.c.b16 %v1433, %v1432
    %v1460 = vpack.c.b16 %v1435, %v1434
    %v1461 = vpack.c.b16 %v1437, %v1436
    %v1462 = vpack.c.b16 %v1439, %v1438
    %v1463 = vpack.c.b16 %v1441, %v1440
    %v1464 = vpack.c.b16 %v1443, %v1442
    %v1465 = vpack.c.b16 %v1445, %v1444
    %v1466 = vpack.c.b16 %v1447, %v1446
    %v1467 = vpack.c.b16 %v1449, %v1448
    %v1468 = vpack.c.b16 %v1451, %v1450
    %v1469 = vpack.c.b16 %v1453, %v1452
    %1486 = vmatprep.subr.bf16.mxu0 0
    %1487 = vmatpush1.bf16.msra.mxu0 %v1461
    %1488 = vmatprep.subr.bf16.mxu0 0
    %1489 = vmatpush1.bf16.msra.mxu0 %v1460
    %1490 = vmatprep.subr.bf16.mxu0 0
    %1491 = vmatpush1.bf16.msra.mxu0 %v1459
    %1492 = vmatprep.subr.bf16.mxu0 0
    %1493 = vmatpush1.bf16.msra.mxu0 %v1458
    %1494 = vmatprep.subr.bf16.mxu0 0
    %1495 = vmatpush1.bf16.msra.mxu0 %v1457
    %1496 = vmatprep.subr.bf16.mxu0 0
    %1497 = vmatpush1.bf16.msra.mxu0 %v1456
    %1498 = vmatprep.subr.bf16.mxu0 0
    %1499 = vmatpush1.bf16.msra.mxu0 %v1455
    %1500 = vmatprep.subr.bf16.mxu0 0
    %1501 = vmatpush1.bf16.msra.mxu0 %v1454
    %1502 = vmatprep.subr.bf16.mxu0 0
    %1503 = vmatpush2.bf16.msra.mxu0 %v1469
    %1504 = vmatprep.subr.bf16.mxu0 0
    %1505 = vmatpush2.bf16.msra.mxu0 %v1468
    %1506 = vmatprep.subr.bf16.mxu0 0
    %1507 = vmatpush2.bf16.msra.mxu0 %v1467
    %1508 = vmatprep.subr.bf16.mxu0 0
    %1509 = vmatpush2.bf16.msra.mxu0 %v1466
    %1510 = vmatprep.subr.bf16.mxu0 0
    %1511 = vmatpush2.bf16.msra.mxu0 %v1465
    %1512 = vmatprep.subr.bf16.mxu0 0
    %1513 = vmatpush2.bf16.msra.mxu0 %v1464
    %1514 = vmatprep.subr.bf16.mxu0 0
    %1515 = vmatpush2.bf16.msra.mxu0 %v1463
    %1516 = vmatprep.subr.bf16.mxu0 0
    %1517 = vmatpush2.bf16.msra.mxu0 %v1462
    %1518 = vmatprep.mubr.bf16.mxu0 %v1350
    %1519 = vmatmul.mubr.bf16.gmra.mxu0 %v1349
    %v1520 = vpop.f32.mrf.mxu0
    %v1521 = vadd.f32 %v1388, %v1520
    %v1522 = vpop.f32.mrf.mxu0
    %v1523 = vpop.f32.mrf.mxu0
    %v1524 = vpop.f32.mrf.mxu0
    %1525 = vdwg.mxu0
    %1526 = vst [vmem:[#allocation11] sm:$0x3] %v1521
    %1528 = vrot.lane.b32.xlu0 %v1521, 112
    %v1529 = vpop.permute.xlu0 %1528
    %1531 = vrot.lane.b32.xlu0 %v1521, 96
    %v1532 = vpop.permute.xlu0 %1531
    %1534 = vrot.lane.b32.xlu0 %v1521, 80
    %v1535 = vpop.permute.xlu0 %1534
    %1537 = vrot.lane.b32.xlu0 %v1521, 64
    %v1538 = vpop.permute.xlu0 %1537
    %1540 = vrot.lane.b32.xlu0 %v1521, 48
    %v1541 = vpop.permute.xlu0 %1540
    %1543 = vrot.lane.b32.xlu0 %v1521, 32
    %v1544 = vpop.permute.xlu0 %1543
    %1546 = vrot.lane.b32.xlu0 %v1521, 16
    %v1547 = vpop.permute.xlu0 %1546
    %v1549 = vcombine.low %v1521, %v1532
    %v1551 = vunpack.c.l.s4 1983009808
    %v1552 = vunpack.c.0.s8 %v1551
    %v1553 = vlaneseq
    %v1554 = vshrl.u32 %v1553, 7
    %v1555 = vsub.s32 %v1552, %v1554
    %v1556 = vrot.slane %v1549, %v1555
    %v1557 = vcombine.low %v1529, %v1535
    %v1559 = vunpack.c.l.s4 1983009808
    %v1560 = vunpack.c.0.s8 %v1559
    %v1561 = vlaneseq
    %v1562 = vshrl.u32 %v1561, 7
    %v1563 = vsub.s32 %v1560, %v1562
    %v1564 = vrot.slane %v1557, %v1563
    %v1565 = vcombine.low %v1538, %v1544
    %v1567 = vunpack.c.l.s4 1983009808
    %v1568 = vunpack.c.0.s8 %v1567
    %v1569 = vlaneseq
    %v1570 = vshrl.u32 %v1569, 7
    %v1571 = vsub.s32 %v1568, %v1570
    %v1572 = vrot.slane %v1565, %v1571
    %v1573 = vcombine.low %v1541, %v1547
    %v1575 = vunpack.c.l.s4 1983009808
    %v1576 = vunpack.c.0.s8 %v1575
    %v1577 = vlaneseq
    %v1578 = vshrl.u32 %v1577, 7
    %v1579 = vsub.s32 %v1576, %v1578
    %v1580 = vrot.slane %v1573, %v1579
    %v1581 = vcombine.low %v1556, %v1564
    %v1583 = vunpack.c.l.s4 1934713408
    %v1584 = vunpack.c.0.s8 %v1583
    %v1585 = vlaneseq
    %v1586 = vshrl.u32 %v1585, 7
    %v1587 = vsub.s32 %v1584, %v1586
    %v1588 = vrot.slane %v1581, %v1587
    %v1589 = vcombine.low %v1572, %v1580
    %v1591 = vunpack.c.l.s4 1934713408
    %v1592 = vunpack.c.0.s8 %v1591
    %v1593 = vlaneseq
    %v1594 = vshrl.u32 %v1593, 7
    %v1595 = vsub.s32 %v1592, %v1594
    %v1596 = vrot.slane %v1589, %v1595
    %v1597 = vcombine.low %v1588, %v1596
    %v1598 = vcombine.high %v1588, %v1596
    %vm1599 = vcmask 130048
    %v1600 = vsel %vm1599, %v1597, -inf
    %1601 = vmax.xlane.f32.xlu0 %v1600
    %v1602 = vpop.xlane.xlu0 %1601
    %v1603 = vsel %vm1599, %v1598, -inf
    %1604 = vmax.xlane.f32.xlu0 %v1603
    %v1605 = vpop.xlane.xlu0 %1604
    %v1606 = vcombine.high %v1602, 0.0
    %v1608 = vunpack.c.l.s4 1983009808
    %v1609 = vunpack.c.0.s8 %v1608
    %v1610 = vlaneseq
    %v1611 = vshrl.u32 %v1610, 7
    %v1612 = vsub.s32 %v1609, %v1611
    %v1613 = vrot.slane %v1602, %v1612
    %v1615 = vunpack.c.l.s4 1983009808
    %v1616 = vunpack.c.0.s8 %v1615
    %v1617 = vlaneseq
    %v1618 = vshrl.u32 %v1617, 7
    %v1619 = vsub.s32 %v1616, %v1618
    %v1620 = vrot.slane %v1606, %v1619
    %v1621 = vcombine.high %v1605, 0.0
    %v1623 = vunpack.c.l.s4 1983009808
    %v1624 = vunpack.c.0.s8 %v1623
    %v1625 = vlaneseq
    %v1626 = vshrl.u32 %v1625, 7
    %v1627 = vsub.s32 %v1624, %v1626
    %v1628 = vrot.slane %v1605, %v1627
    %v1630 = vunpack.c.l.s4 1983009808
    %v1631 = vunpack.c.0.s8 %v1630
    %v1632 = vlaneseq
    %v1633 = vshrl.u32 %v1632, 7
    %v1634 = vsub.s32 %v1631, %v1633
    %v1635 = vrot.slane %v1621, %v1634
    %v1636 = vcombine.low %v1613, %v1628
    %v1637 = vcombine.high %v1613, %v1628
    %v1639 = vunpack.c.l.s4 1934713408
    %v1640 = vunpack.c.0.s8 %v1639
    %v1641 = vlaneseq
    %v1642 = vshrl.u32 %v1641, 7
    %v1643 = vsub.s32 %v1640, %v1642
    %v1644 = vrot.slane %v1636, %v1643
    %v1646 = vunpack.c.l.s4 1934713408
    %v1647 = vunpack.c.0.s8 %v1646
    %v1648 = vlaneseq
    %v1649 = vshrl.u32 %v1648, 7
    %v1650 = vsub.s32 %v1647, %v1649
    %v1651 = vrot.slane %v1637, %v1650
    %v1652 = vcombine.low %v1620, %v1635
    %v1653 = vcombine.high %v1620, %v1635
    %v1655 = vunpack.c.l.s4 1934713408
    %v1656 = vunpack.c.0.s8 %v1655
    %v1657 = vlaneseq
    %v1658 = vshrl.u32 %v1657, 7
    %v1659 = vsub.s32 %v1656, %v1658
    %v1660 = vrot.slane %v1652, %v1659
    %v1662 = vunpack.c.l.s4 1934713408
    %v1663 = vunpack.c.0.s8 %v1662
    %v1664 = vlaneseq
    %v1665 = vshrl.u32 %v1664, 7
    %v1666 = vsub.s32 %v1663, %v1665
    %v1667 = vrot.slane %v1653, %v1666
    %v1668 = vcombine.high %v1644, 0.0
    %v1669 = vcombine.high %v1651, 0.0
    %v1670 = vcombine.high %v1660, 0.0
    %v1671 = vcombine.high %v1667, 0.0
    %1673 = vrot.lane.b32.xlu0 %v1668, 16
    %v1674 = vpop.permute.xlu0 %1673
    %1677 = vrot.lane.b32.xlu0 %v1651, 32
    %v1678 = vpop.permute.xlu0 %1677
    %1681 = vrot.lane.b32.xlu0 %v1669, 48
    %v1682 = vpop.permute.xlu0 %1681
    %1685 = vrot.lane.b32.xlu0 %v1660, 64
    %v1686 = vpop.permute.xlu0 %1685
    %1689 = vrot.lane.b32.xlu0 %v1670, 80
    %v1690 = vpop.permute.xlu0 %1689
    %1693 = vrot.lane.b32.xlu0 %v1667, 96
    %v1694 = vpop.permute.xlu0 %1693
    %1697 = vrot.lane.b32.xlu0 %v1671, 112
    %v1698 = vpop.permute.xlu0 %1697
    %v1700 = vsel %vm1599, %v1644, %v1674
    %vm1701 = vcmask 261120
    %v1702 = vsel %vm1701, %v1700, %v1678
    %vm1703 = vcmask 392192
    %v1704 = vsel %vm1703, %v1702, %v1682
    %vm1705 = vcmask 523264
    %v1706 = vsel %vm1705, %v1704, %v1686
    %vm1707 = vcmask 654336
    %v1708 = vsel %vm1707, %v1706, %v1690
    %vm1709 = vcmask 785408
    %v1710 = vsel %vm1709, %v1708, %v1694
    %vm1711 = vcmask 916480
    %v1712 = vsel %vm1711, %v1710, %v1698
    %v1713 = vsub.f32 %v1521, %v1712
    %v1714 = vmul.f32 %v1713, 1.442695
    %v1715 = vpow.pop %v1714
    %v1716 = vpack.c.bf16 %v1715, %v1715
    %v1717 = vld [vmem:[#allocation5] sm:$0xf]
    %v1718 = vld [vmem:[#allocation5 + $0x4] sm:$0xf]
    %v1719 = vld [vmem:[#allocation5 + $0x8] sm:$0xf]
    %v1720 = vld [vmem:[#allocation5 + $0xc] sm:$0xf]
    %v1721 = vld [vmem:[#allocation5 + $0x10] sm:$0xf]
    %v1722 = vld [vmem:[#allocation5 + $0x14] sm:$0xf]
    %v1723 = vld [vmem:[#allocation5 + $0x18] sm:$0xf]
    %v1724 = vld [vmem:[#allocation5 + $0x1c] sm:$0xf]
    %v1725 = vld [vmem:[#allocation5 + $0x20] sm:$0xf]
    %v1726 = vld [vmem:[#allocation5 + $0x24] sm:$0xf]
    %v1727 = vld [vmem:[#allocation5 + $0x28] sm:$0xf]
    %v1728 = vld [vmem:[#allocation5 + $0x2c] sm:$0xf]
    %v1729 = vld [vmem:[#allocation5 + $0x30] sm:$0xf]
    %v1730 = vld [vmem:[#allocation5 + $0x34] sm:$0xf]
    %v1731 = vld [vmem:[#allocation5 + $0x38] sm:$0xf]
    %v1732 = vld [vmem:[#allocation5 + $0x3c] sm:$0xf]
    %v1749 = vunpack.c.l.b16 %v1717
    %v1750 = vunpack.c.l.b16 %v1718
    %v1751 = vunpack.c.l.b16 %v1719
    %v1752 = vunpack.c.l.b16 %v1720
    %v1753 = vunpack.c.l.b16 %v1721
    %v1754 = vunpack.c.l.b16 %v1722
    %v1755 = vunpack.c.l.b16 %v1723
    %v1756 = vunpack.c.l.b16 %v1724
    %v1757 = vunpack.c.l.b16 %v1725
    %v1758 = vunpack.c.l.b16 %v1726
    %v1759 = vunpack.c.l.b16 %v1727
    %v1760 = vunpack.c.l.b16 %v1728
    %v1761 = vunpack.c.l.b16 %v1729
    %v1762 = vunpack.c.l.b16 %v1730
    %v1763 = vunpack.c.l.b16 %v1731
    %v1764 = vunpack.c.l.b16 %v1732
    %v1765 = vpack.c.b16 %v1750, %v1749
    %v1766 = vpack.c.b16 %v1752, %v1751
    %v1767 = vpack.c.b16 %v1754, %v1753
    %v1768 = vpack.c.b16 %v1756, %v1755
    %v1769 = vpack.c.b16 %v1758, %v1757
    %v1770 = vpack.c.b16 %v1760, %v1759
    %v1771 = vpack.c.b16 %v1762, %v1761
    %v1772 = vpack.c.b16 %v1764, %v1763
    %1781 = vmatprep.subr.bf16.mxu0 0
    %1782 = vmatpush1.bf16.msra.mxu0 %v1772
    %1783 = vmatprep.subr.bf16.mxu0 0
    %1784 = vmatpush1.bf16.msra.mxu0 %v1771
    %1785 = vmatprep.subr.bf16.mxu0 0
    %1786 = vmatpush1.bf16.msra.mxu0 %v1770
    %1787 = vmatprep.subr.bf16.mxu0 0
    %1788 = vmatpush1.bf16.msra.mxu0 %v1769
    %1789 = vmatprep.subr.bf16.mxu0 0
    %1790 = vmatpush1.bf16.msra.mxu0 %v1768
    %1791 = vmatprep.subr.bf16.mxu0 0
    %1792 = vmatpush1.bf16.msra.mxu0 %v1767
    %1793 = vmatprep.subr.bf16.mxu0 0
    %1794 = vmatpush1.bf16.msra.mxu0 %v1766
    %1795 = vmatprep.subr.bf16.mxu0 0
    %1796 = vmatpush1.bf16.msra.mxu0 %v1765
    %1797 = vmatprep.subr.bf16.mxu0 0
    %1798 = vmatpush2.bf16.msra.mxu0 0
    %1799 = vmatprep.subr.bf16.mxu0 0
    %1800 = vmatpush2.bf16.msra.mxu0 0
    %1801 = vmatprep.subr.bf16.mxu0 0
    %1802 = vmatpush2.bf16.msra.mxu0 0
    %1803 = vmatprep.subr.bf16.mxu0 0
    %1804 = vmatpush2.bf16.msra.mxu0 0
    %1805 = vmatprep.subr.bf16.mxu0 0
    %1806 = vmatpush2.bf16.msra.mxu0 0
    %1807 = vmatprep.subr.bf16.mxu0 0
    %1808 = vmatpush2.bf16.msra.mxu0 0
    %1809 = vmatprep.subr.bf16.mxu0 0
    %1810 = vmatpush2.bf16.msra.mxu0 0
    %1811 = vmatprep.subr.bf16.mxu0 0
    %1812 = vmatpush2.bf16.msra.mxu0 0
    %1813 = vmatprep.mubr.bf16.mxu0 0
    %1814 = vmatmul.mubr.bf16.gmra.mxu0 %v1716
    %v1815 = vpop.f32.mrf.mxu0
    %v1816 = vadd.f32 0.0, %v1815
    %v1817 = vpop.f32.mrf.mxu0
    %v1818 = vpop.f32.mrf.mxu0
    %v1819 = vpop.f32.mrf.mxu0
    %1820 = vdwg.mxu0
    %v1821 = vrcp.pop %v1816
    %v1822 = vmul.f32 %v1715, %v1821
    %1823 = vst [vmem:[#allocation12] sm:$0x3] %v1822
    // Predicated region
    $region54: #{tpu_custom_call.1} parent=1 // pred_check
      _
    $region55: #{tpu_custom_call.1} parent=1 // pred_check_branch
      %1825 = sbr.rel (0) target = $region57
    $region56: #{tpu_custom_call.1} parent=1 // pred_region
      %s1827 = ssub.s32 32, 32
      %1828 = vsyncadd [#allocation4], %s1827
      %s1830 = sshll.u32 [#allocation11], 4
      %s1831 = int_to_ptr.vmem [resolvable:$true] %s1830
      %1833 = dma.vmem_to_hbm [thread:$0]  %s1831, 32, %s8, [#allocation4]
    $region57: #{tpu_custom_call.1} parent=1 // pred_fallthru
      _
    // Predicated region
    $region58: #{tpu_custom_call.1} parent=1 // pred_check
      _
    $region59: #{tpu_custom_call.1} parent=1 // pred_check_branch
      %1835 = sbr.rel (0) target = $region61
    $region60: #{tpu_custom_call.1} parent=1 // pred_region
      %s1837 = ssub.s32 32, 32
      %1838 = vsyncadd [#allocation13], %s1837
      %s1840 = sshll.u32 [#allocation12], 4
      %s1841 = int_to_ptr.vmem [resolvable:$true] %s1840
      %1843 = dma.vmem_to_hbm [thread:$0]  %s1841, 32, %s9, [#allocation13]
    $region61: #{tpu_custom_call.1} parent=1 // pred_fallthru
      _
    // Predicated region
    $region62: #{tpu_custom_call.1} parent=1 // pred_check
      _
    $region63: #{tpu_custom_call.1} parent=1 // pred_check_branch
      %1845 = sbr.rel (0) target = $region65
    $region64: #{tpu_custom_call.1} parent=1 // pred_region
      %1846 = dma.done [#allocation4], 32
    $region65: #{tpu_custom_call.1} parent=1 // pred_fallthru
      _
    // Predicated region
    $region66: #{tpu_custom_call.1} parent=1 // pred_check
      _
    $region67: #{tpu_custom_call.1} parent=1 // pred_check_branch
      %1848 = sbr.rel (0) target = $region69
    $region68: #{tpu_custom_call.1} parent=1 // pred_region
      %1849 = dma.done [#allocation13], 32
    $region69: #{tpu_custom_call.1} parent=1 // pred_fallthru
      _
    %1850 = vsyncpa [#allocation3], 1
    %1851 = vsyncpa [#allocation6], 1
    %1852 = vsyncpa [#allocation9], 1
    %1853 = vsyncpa [#allocation4], 1
    %1854 = vsyncpa [#allocation13], 1

</llo_original>
